<compile_context>
chip_gen: v7x
topology: tpu7x:2x2x1
jax: 0.10.0
libtpu: 0.0.40
codegen_flags: <defaults>
</compile_context>

<pallas_src>
import math
import functools

import jax
import jax.numpy as jnp
from jax import lax
from jax.experimental import pallas as pl
from jax.experimental.pallas import tpu as pltpu

# ---------------- small-BERT config (synthetic, deterministic init) ----------
VOCAB = 64
MAX_POS = 64
TYPE_VOCAB = 2
HIDDEN = 32
NUM_HEADS = 2
HEAD_DIM = HIDDEN // NUM_HEADS
INTERMEDIATE = 64
NUM_LAYERS = 2
LN_EPS = 1e-12  # BERT default

# MXU operand dtype.  f32 here (toy shapes, overhead-bound, and the correctness
# check vs the f32 reference is 1e-3).  At real BERT sizes set jnp.bfloat16 on
# v6e/v7x (2x MXU, half the weight DMA / VMEM) while keeping
# preferred_element_type=f32 and all LayerNorm/softmax math in f32 (v5e has no
# bf16 VPU/EUP).
MATMUL_DTYPE = jnp.float32


# ---------------- fused per-(batch, layer) kernel -----------------------------
def _bert_layer_kernel(ids_ref, semb_ref, wemb_ref, eg_ref, eb_ref,
                       wqkv_ref, bqkv_ref, wo_ref, bo_ref, ln1g_ref, ln1b_ref,
                       w1_ref, b1_ref, w2_ref, b2_ref, ln2g_ref, ln2b_ref,
                       out_ref, x_ref, *,
                       num_heads, head_dim, hidden, eps):
    f32 = jnp.float32
    H = hidden
    S = x_ref.shape[0]
    layer = pl.program_id(1)

    def layernorm(t, g, b):
        mean = jnp.mean(t, axis=-1, keepdims=True)
        c = t - mean
        var = jnp.mean(c * c, axis=-1, keepdims=True)
        return c * lax.rsqrt(var + eps) * g + b

    def gelu(t):
        # BERT uses exact (erf-based) gelu (matches the pure-JAX reference).
        return 0.5 * t * (1.0 + lax.erf(t * (1.0 / math.sqrt(2.0))))

    # ---- embeddings + embedding LayerNorm: only on the first layer step ----
    @pl.when(layer == 0)
    def _():
        ids = ids_ref[...]                                          # (S, 1) int32
        vocab = wemb_ref.shape[0]
        onehot = (ids == lax.broadcasted_iota(jnp.int32, (S, vocab), 1)
                  ).astype(MATMUL_DTYPE)                            # (S, VOCAB)
        emb = jnp.dot(onehot, wemb_ref[...].astype(MATMUL_DTYPE),
                      preferred_element_type=f32) + semb_ref[...]   # (S, H)
        x_ref[...] = layernorm(emb, eg_ref[...], eb_ref[...])

    x = x_ref[...]                                                  # (S, H)

    # ---- fused QKV: one (S, H) x (H, 3H) matmul; Q pre-scaled by 1/sqrt(dH) ----
    qkv = jnp.dot(x.astype(MATMUL_DTYPE), wqkv_ref[0].astype(MATMUL_DTYPE),
                  preferred_element_type=f32) + bqkv_ref[0]         # (S, 3H)

    ctx_heads = []
    for h in range(num_heads):
        q = qkv[:, h * head_dim:(h + 1) * head_dim]                 # (S, dH)
        k = qkv[:, H + h * head_dim:H + (h + 1) * head_dim]         # (S, dH)
        v = qkv[:, 2 * H + h * head_dim:2 * H + (h + 1) * head_dim]  # (S, dH)
        # contract both on the feature dim -> no explicit k.T relayout
        s = lax.dot_general(q, k, (((1,), (1,)), ((), ())),
                            preferred_element_type=f32)             # (S, S)
        m = jnp.max(s, axis=-1, keepdims=True)
        p = jnp.exp(s - m)
        p = p * pl.reciprocal(jnp.sum(p, axis=-1, keepdims=True), approx=True)
        ctx_heads.append(jnp.dot(p.astype(MATMUL_DTYPE), v.astype(MATMUL_DTYPE),
                                 preferred_element_type=f32))       # (S, dH)
    ctx = jnp.concatenate(ctx_heads, axis=-1)                       # (S, H) lane concat

    attn = jnp.dot(ctx.astype(MATMUL_DTYPE), wo_ref[0].astype(MATMUL_DTYPE),
                   preferred_element_type=f32) + bo_ref[0]          # one wo matmul
    x = layernorm(x + attn, ln1g_ref[0], ln1b_ref[0])

    # ---- feed forward ----
    h1 = gelu(jnp.dot(x.astype(MATMUL_DTYPE), w1_ref[0].astype(MATMUL_DTYPE),
                      preferred_element_type=f32) + b1_ref[0])
    ffn = jnp.dot(h1.astype(MATMUL_DTYPE), w2_ref[0].astype(MATMUL_DTYPE),
                  preferred_element_type=f32) + b2_ref[0]
    x = layernorm(x + ffn, ln2g_ref[0], ln2b_ref[0])
    x_ref[...] = x

    @pl.when(layer == pl.num_programs(1) - 1)
    def _():
        # TODO(synk): masked 32-lane store at toy H=32; lane-dense automatically at H>=128.
        out_ref[...] = x.astype(out_ref.dtype)


# ---------------- parameter init (deterministic, synthetic) ------------------
def init_params(key):
    def normal(key, shape):
        return 0.02 * jax.random.normal(key, shape, dtype=jnp.float32)

    keys = jax.random.split(key, 3 + NUM_LAYERS)
    params = {
        "word_emb": normal(keys[0], (VOCAB, HIDDEN)),
        "pos_emb": normal(keys[1], (MAX_POS, HIDDEN)),
        "type_emb": normal(keys[2], (TYPE_VOCAB, HIDDEN)),
        "emb_ln_g": jnp.ones((HIDDEN,), jnp.float32),
        "emb_ln_b": jnp.zeros((HIDDEN,), jnp.float32),
        "layers": [],
    }
    for li in range(NUM_LAYERS):
        lk = jax.random.split(keys[3 + li], 6)
        layer = {
            "wq": normal(lk[0], (HIDDEN, HIDDEN)), "bq": jnp.zeros((HIDDEN,), jnp.float32),
            "wk": normal(lk[1], (HIDDEN, HIDDEN)), "bk": jnp.zeros((HIDDEN,), jnp.float32),
            "wv": normal(lk[2], (HIDDEN, HIDDEN)), "bv": jnp.zeros((HIDDEN,), jnp.float32),
            "wo": normal(lk[3], (HIDDEN, HIDDEN)), "bo": jnp.zeros((HIDDEN,), jnp.float32),
            "ln1_g": jnp.ones((HIDDEN,), jnp.float32), "ln1_b": jnp.zeros((HIDDEN,), jnp.float32),
            "w1": normal(lk[4], (HIDDEN, INTERMEDIATE)), "b1": jnp.zeros((INTERMEDIATE,), jnp.float32),
            "w2": normal(lk[5], (INTERMEDIATE, HIDDEN)), "b2": jnp.zeros((HIDDEN,), jnp.float32),
            "ln2_g": jnp.ones((HIDDEN,), jnp.float32), "ln2_b": jnp.zeros((HIDDEN,), jnp.float32),
        }
        params["layers"].append(layer)
    return params


# ---------------- one-time host-side weight packing ---------------------------
def pack_params(params):
    H = HIDDEN
    inv = 1.0 / math.sqrt(HEAD_DIM)     # score scale folded into Q weight/bias

    def stack(fn):
        return jnp.stack([fn(ly) for ly in params["layers"]])

    return {
        "word_emb": params["word_emb"].astype(MATMUL_DTYPE),
        "pos_emb": params["pos_emb"],
        "type_emb": params["type_emb"],
        "emb_ln_g": params["emb_ln_g"].reshape(1, H),
        "emb_ln_b": params["emb_ln_b"].reshape(1, H),
        # fused QKV weights (L, H, 3H); Q columns pre-scaled by 1/sqrt(dH)
        "wqkv": stack(lambda l: jnp.concatenate(
            [l["wq"] * inv, l["wk"], l["wv"]], axis=1)).astype(MATMUL_DTYPE),
        "bqkv": stack(lambda l: jnp.concatenate(
            [l["bq"] * inv, l["bk"], l["bv"]]).reshape(1, 3 * H)),
        "wo": stack(lambda l: l["wo"]).astype(MATMUL_DTYPE),
        "bo": stack(lambda l: l["bo"].reshape(1, H)),
        "ln1_g": stack(lambda l: l["ln1_g"].reshape(1, H)),
        "ln1_b": stack(lambda l: l["ln1_b"].reshape(1, H)),
        "w1": stack(lambda l: l["w1"]).astype(MATMUL_DTYPE),
        "b1": stack(lambda l: l["b1"].reshape(1, INTERMEDIATE)),
        "w2": stack(lambda l: l["w2"]).astype(MATMUL_DTYPE),
        "b2": stack(lambda l: l["b2"].reshape(1, H)),
        "ln2_g": stack(lambda l: l["ln2_g"].reshape(1, H)),
        "ln2_b": stack(lambda l: l["ln2_b"].reshape(1, H)),
    }


# ---------------- BERT forward (last_hidden_state) ---------------------------
def get_bert_forward(packed, input_ids):
    B, S = input_ids.shape
    M = B * S
    H, L = HIDDEN, NUM_LAYERS

    ids = input_ids.reshape(M, 1).astype(jnp.int32)
    # pos + token-type rows are batch-independent -> one tiny shared (S, H) slab
    static_emb = (packed["pos_emb"][:S] + packed["type_emb"][0][None, :]).astype(jnp.float32)

    args = (ids, static_emb, packed["word_emb"],
            packed["emb_ln_g"], packed["emb_ln_b"],
            packed["wqkv"], packed["bqkv"], packed["wo"], packed["bo"],
            packed["ln1_g"], packed["ln1_b"],
            packed["w1"], packed["b1"], packed["w2"], packed["b2"],
            packed["ln2_g"], packed["ln2_b"])

    def batch_spec(shape):   # per-batch block of a (B*S, ...) array
        rest = (0,) * (len(shape) - 1)
        return pl.BlockSpec((S,) + shape[1:], lambda b, l, _r=rest: (b,) + _r)

    def shared_spec(shape):  # whole array, same block every grid step
        zeros = (0,) * len(shape)
        return pl.BlockSpec(shape, lambda b, l, _z=zeros: _z)

    def layer_spec(shape):   # one layer's slice per step of the layer axis
        rest = (0,) * (len(shape) - 1)
        return pl.BlockSpec((1,) + shape[1:], lambda b, l, _r=rest: (l,) + _r)

    in_specs = [batch_spec(ids.shape),
                shared_spec(static_emb.shape),
                shared_spec(packed["word_emb"].shape),
                shared_spec(packed["emb_ln_g"].shape),
                shared_spec(packed["emb_ln_b"].shape)]
    in_specs += [layer_spec(a.shape) for a in args[5:]]

    kernel = functools.partial(_bert_layer_kernel,
                               num_heads=NUM_HEADS, head_dim=HEAD_DIM,
                               hidden=H, eps=LN_EPS)

    out = pl.pallas_call(
        kernel,
        out_shape=jax.ShapeDtypeStruct((M, H), jnp.float32),
        grid_spec=pltpu.PrefetchScalarGridSpec(
            num_scalar_prefetch=0,
            grid=(B, L),                       # batch (parallel), layer (sequential)
            in_specs=in_specs,
            out_specs=pl.BlockSpec((S, H), lambda b, l: (b, 0)),
            scratch_shapes=[pltpu.VMEM((S, H), jnp.float32)]),   # resident activation
        compiler_params=pltpu.CompilerParams(
            dimension_semantics=("parallel", "arbitrary"),
            vmem_limit_bytes=32 * 1024 * 1024),
    )(*args)

    return out.reshape(B, S, H)   # == embeddings[0] (last_hidden_state)


# ---------------- pure-JAX reference (for correctness check) -----------------
def bert_reference(params, input_ids):
    B, S = input_ids.shape
    H, nH, dH = HIDDEN, NUM_HEADS, HEAD_DIM

    def layernorm(t, g, b):
        mean = jnp.mean(t, axis=-1, keepdims=True)
        var = jnp.mean((t - mean) ** 2, axis=-1, keepdims=True)
        return (t - mean) * jax.lax.rsqrt(var + LN_EPS) * g + b

    def gelu(t):
        return 0.5 * t * (1.0 + jax.lax.erf(t / math.sqrt(2.0)))

    we = jnp.take(params["word_emb"], input_ids, axis=0)
    pe = params["pos_emb"][:S][None]
    te = params["type_emb"][0][None, None]
    x = layernorm(we + pe + te, params["emb_ln_g"], params["emb_ln_b"])

    for ly in params["layers"]:
        q = (x @ ly["wq"] + ly["bq"]).reshape(B, S, nH, dH).transpose(0, 2, 1, 3)
        k = (x @ ly["wk"] + ly["bk"]).reshape(B, S, nH, dH).transpose(0, 2, 1, 3)
        v = (x @ ly["wv"] + ly["bv"]).reshape(B, S, nH, dH).transpose(0, 2, 1, 3)
        s = jnp.einsum("bhqd,bhkd->bhqk", q, k) / math.sqrt(dH)
        p = jax.nn.softmax(s, axis=-1)
        ctx = jnp.einsum("bhqk,bhkd->bhqd", p, v).transpose(0, 2, 1, 3).reshape(B, S, H)
        attn = ctx @ ly["wo"] + ly["bo"]
        x = layernorm(x + attn, ly["ln1_g"], ly["ln1_b"])
        h1 = gelu(x @ ly["w1"] + ly["b1"])
        x = layernorm(x + h1 @ ly["w2"] + ly["b2"], ly["ln2_g"], ly["ln2_b"])
    return x


if __name__ == "__main__":
    key = jax.random.PRNGKey(0)
    k_param, k_ids = jax.random.split(key)
    params = init_params(k_param)
    packed = pack_params(params)

    B, S = 2, 8
    input_ids = jax.random.randint(k_ids, (B, S), 0, VOCAB, dtype=jnp.int32)

    out = jax.jit(get_bert_forward)(packed, input_ids)
    out = jax.block_until_ready(out)
    assert out.shape == (B, S, HIDDEN)

    ref = bert_reference(params, input_ids)
    assert jnp.allclose(out, ref, atol=1e-3, rtol=1e-3), "mismatch vs pure-JAX reference"

    print("KERNEL_OK")
</pallas_src>

<mosaic_0001>
module attributes {stable_mosaic.version = 11 : i64} {
  func.func @_bert_layer_kernel(%arg0: i32, %arg1: i32, %arg2: memref<8x1xi32, #tpu.memory_space<vmem>>, %arg3: memref<8x32xf32, #tpu.memory_space<vmem>>, %arg4: memref<64x32xf32, #tpu.memory_space<vmem>>, %arg5: memref<1x32xf32, #tpu.memory_space<vmem>>, %arg6: memref<1x32xf32, #tpu.memory_space<vmem>>, %arg7: memref<1x32x96xf32, #tpu.memory_space<vmem>>, %arg8: memref<1x1x96xf32, #tpu.memory_space<vmem>>, %arg9: memref<1x32x32xf32, #tpu.memory_space<vmem>>, %arg10: memref<1x1x32xf32, #tpu.memory_space<vmem>>, %arg11: memref<1x1x32xf32, #tpu.memory_space<vmem>>, %arg12: memref<1x1x32xf32, #tpu.memory_space<vmem>>, %arg13: memref<1x32x64xf32, #tpu.memory_space<vmem>>, %arg14: memref<1x1x64xf32, #tpu.memory_space<vmem>>, %arg15: memref<1x64x32xf32, #tpu.memory_space<vmem>>, %arg16: memref<1x1x32xf32, #tpu.memory_space<vmem>>, %arg17: memref<1x1x32xf32, #tpu.memory_space<vmem>>, %arg18: memref<1x1x32xf32, #tpu.memory_space<vmem>>, %arg19: memref<8x32xf32, #tpu.memory_space<vmem>>, %arg20: memref<8x32xf32, #tpu.memory_space<vmem>>) attributes {dimension_semantics = [#tpu.dimension_semantics<parallel>, #tpu.dimension_semantics<arbitrary>], iteration_bounds = array<i64: 2, 2>, scalar_prefetch = 0 : i64, scratch_operands = 1 : i64, tpu.core_type = #tpu.core_type<tc>, window_params = [{transform_indices = @transform_0, window_bounds = array<i64: 8, 1>}, {pipeline_mode = #tpu.pipeline_mode<synchronous>, transform_indices = @transform_1, window_bounds = array<i64: 8, 32>}, {pipeline_mode = #tpu.pipeline_mode<synchronous>, transform_indices = @transform_2, window_bounds = array<i64: 64, 32>}, {pipeline_mode = #tpu.pipeline_mode<synchronous>, transform_indices = @transform_3, window_bounds = array<i64: 1, 32>}, {pipeline_mode = #tpu.pipeline_mode<synchronous>, transform_indices = @transform_4, window_bounds = array<i64: 1, 32>}, {transform_indices = @transform_5, window_bounds = array<i64: 1, 32, 96>}, {transform_indices = @transform_6, window_bounds = array<i64: 1, 1, 96>}, {transform_indices = @transform_7, window_bounds = array<i64: 1, 32, 32>}, {transform_indices = @transform_8, window_bounds = array<i64: 1, 1, 32>}, {transform_indices = @transform_9, window_bounds = array<i64: 1, 1, 32>}, {transform_indices = @transform_10, window_bounds = array<i64: 1, 1, 32>}, {transform_indices = @transform_11, window_bounds = array<i64: 1, 32, 64>}, {transform_indices = @transform_12, window_bounds = array<i64: 1, 1, 64>}, {transform_indices = @transform_13, window_bounds = array<i64: 1, 64, 32>}, {transform_indices = @transform_14, window_bounds = array<i64: 1, 1, 32>}, {transform_indices = @transform_15, window_bounds = array<i64: 1, 1, 32>}, {transform_indices = @transform_16, window_bounds = array<i64: 1, 1, 32>}, {transform_indices = @transform_17, window_bounds = array<i64: 8, 32>}]} {
    %c0_i32 = arith.constant 0 : i32
    %0 = arith.cmpi eq, %arg1, %c0_i32 : i32
    %1 = arith.extui %0 : i1 to i32
    %c0_i32_0 = arith.constant 0 : i32
    %2 = arith.cmpi ne, %1, %c0_i32_0 : i32
    scf.if %2 {
      %c0_65 = arith.constant 0 : index
      %c0_66 = arith.constant 0 : index
      %125 = vector.load %arg2[%c0_65, %c0_66] : memref<8x1xi32, #tpu.memory_space<vmem>>, vector<8x1xi32>
      %126 = tpu.iota {dimensions = array<i32: 1>} : vector<8x64xi32>
      %127 = vector.broadcast %125 : vector<8x1xi32> to vector<8x64xi32>
      %128 = arith.cmpi eq, %127, %126 : vector<8x64xi32>
      %129 = arith.extui %128 : vector<8x64xi1> to vector<8x64xi32>
      %130 = arith.sitofp %129 : vector<8x64xi32> to vector<8x64xf32>
      %c0_67 = arith.constant 0 : index
      %c0_68 = arith.constant 0 : index
      %131 = vector.load %arg4[%c0_67, %c0_68] : memref<64x32xf32, #tpu.memory_space<vmem>>, vector<64x32xf32>
      %cst_69 = arith.constant dense<0.000000e+00> : vector<8x32xf32>
      %132 = tpu.matmul %130, %131, %cst_69 {dimension_numbers = #tpu.dot_dimension_numbers<[1], [0], [0], [1], [0, 0, 1, 1], [], []>} : vector<8x64xf32>, vector<64x32xf32>, vector<8x32xf32> -> vector<8x32xf32>
      %c0_70 = arith.constant 0 : index
      %c0_71 = arith.constant 0 : index
      %133 = vector.load %arg3[%c0_70, %c0_71] : memref<8x32xf32, #tpu.memory_space<vmem>>, vector<8x32xf32>
      %134 = arith.addf %132, %133 : vector<8x32xf32>
      %c0_72 = arith.constant 0 : index
      %c0_73 = arith.constant 0 : index
      %135 = vector.load %arg5[%c0_72, %c0_73] : memref<1x32xf32, #tpu.memory_space<vmem>>, vector<1x32xf32>
      %c0_74 = arith.constant 0 : index
      %c0_75 = arith.constant 0 : index
      %136 = vector.load %arg6[%c0_74, %c0_75] : memref<1x32xf32, #tpu.memory_space<vmem>>, vector<1x32xf32>
      %cst_76 = arith.constant dense<0.000000e+00> : vector<8xf32>
      %137 = vector.multi_reduction <add>, %134, %cst_76 [1] : vector<8x32xf32> to vector<8xf32>
      %138 = vector.shape_cast %137 : vector<8xf32> to vector<8x1xf32>
      %cst_77 = arith.constant 3.200000e+01 : f32
      %139 = vector.broadcast %cst_77 : f32 to vector<8x1xf32>
      %140 = arith.divf %138, %139 : vector<8x1xf32>
      %141 = vector.broadcast %140 : vector<8x1xf32> to vector<8x32xf32>
      %142 = arith.subf %134, %141 : vector<8x32xf32>
      %143 = arith.mulf %142, %142 : vector<8x32xf32>
      %cst_78 = arith.constant dense<0.000000e+00> : vector<8xf32>
      %144 = vector.multi_reduction <add>, %143, %cst_78 [1] : vector<8x32xf32> to vector<8xf32>
      %145 = vector.shape_cast %144 : vector<8xf32> to vector<8x1xf32>
      %cst_79 = arith.constant 3.200000e+01 : f32
      %146 = vector.broadcast %cst_79 : f32 to vector<8x1xf32>
      %147 = arith.divf %145, %146 : vector<8x1xf32>
      %cst_80 = arith.constant 9.99999996E-13 : f32
      %148 = vector.broadcast %cst_80 : f32 to vector<8x1xf32>
      %149 = arith.addf %147, %148 : vector<8x1xf32>
      %150 = math.rsqrt %149 : vector<8x1xf32>
      %151 = vector.broadcast %150 : vector<8x1xf32> to vector<8x32xf32>
      %152 = arith.mulf %142, %151 : vector<8x32xf32>
      %153 = vector.broadcast %135 : vector<1x32xf32> to vector<8x32xf32>
      %154 = arith.mulf %152, %153 : vector<8x32xf32>
      %155 = vector.broadcast %136 : vector<1x32xf32> to vector<8x32xf32>
      %156 = arith.addf %154, %155 : vector<8x32xf32>
      %c0_81 = arith.constant 0 : index
      %c0_82 = arith.constant 0 : index
      %157 = vector.load %arg20[%c0_81, %c0_82] : memref<8x32xf32, #tpu.memory_space<vmem>>, vector<8x32xf32>
      tpu.vector_store %arg20[%c0_81, %c0_82], %156 {strides = array<i32>} : memref<8x32xf32, #tpu.memory_space<vmem>>, vector<8x32xf32>,
    } else {
    }
    %c0 = arith.constant 0 : index
    %c0_1 = arith.constant 0 : index
    %3 = vector.load %arg20[%c0, %c0_1] : memref<8x32xf32, #tpu.memory_space<vmem>>, vector<8x32xf32>
    %c0_2 = arith.constant 0 : index
    %c0_3 = arith.constant 0 : index
    %c0_4 = arith.constant 0 : index
    %4 = vector.load %arg7[%c0_2, %c0_3, %c0_4] : memref<1x32x96xf32, #tpu.memory_space<vmem>>, vector<1x32x96xf32>
    %5 = vector.shape_cast %4 : vector<1x32x96xf32> to vector<32x96xf32>
    %cst = arith.constant dense<0.000000e+00> : vector<8x96xf32>
    %6 = tpu.matmul %3, %5, %cst {dimension_numbers = #tpu.dot_dimension_numbers<[1], [0], [0], [1], [0, 0, 1, 1], [], []>} : vector<8x32xf32>, vector<32x96xf32>, vector<8x96xf32> -> vector<8x96xf32>
    %c0_5 = arith.constant 0 : index
    %c0_6 = arith.constant 0 : index
    %c0_7 = arith.constant 0 : index
    %7 = vector.load %arg8[%c0_5, %c0_6, %c0_7] : memref<1x1x96xf32, #tpu.memory_space<vmem>>, vector<1x1x96xf32>
    %8 = vector.shape_cast %7 : vector<1x1x96xf32> to vector<1x96xf32>
    %9 = vector.broadcast %8 : vector<1x96xf32> to vector<8x96xf32>
    %10 = arith.addf %6, %9 : vector<8x96xf32>
    %11 = vector.extract_strided_slice %10 {offsets = [0, 0], sizes = [8, 16], strides = [1, 1]} : vector<8x96xf32> to vector<8x16xf32>
    %12 = vector.extract_strided_slice %10 {offsets = [0, 32], sizes = [8, 16], strides = [1, 1]} : vector<8x96xf32> to vector<8x16xf32>
    %13 = vector.extract_strided_slice %10 {offsets = [0, 64], sizes = [8, 16], strides = [1, 1]} : vector<8x96xf32> to vector<8x16xf32>
    %cst_8 = arith.constant dense<0.000000e+00> : vector<8x8xf32>
    %14 = tpu.matmul %11, %12, %cst_8 {dimension_numbers = #tpu.dot_dimension_numbers<[1], [1], [0], [0], [0, 0, 1, 0], [], []>} : vector<8x16xf32>, vector<8x16xf32>, vector<8x8xf32> -> vector<8x8xf32>
    %cst_9 = arith.constant dense<0xFF800000> : vector<8xf32>
    %15 = vector.multi_reduction <maximumf>, %14, %cst_9 [1] : vector<8x8xf32> to vector<8xf32>
    %16 = vector.shape_cast %15 : vector<8xf32> to vector<8x1xf32>
    %17 = vector.broadcast %16 : vector<8x1xf32> to vector<8x8xf32>
    %18 = arith.subf %14, %17 : vector<8x8xf32>
    %19 = math.exp %18 : vector<8x8xf32>
    %cst_10 = arith.constant dense<0.000000e+00> : vector<8xf32>
    %20 = vector.multi_reduction <add>, %19, %cst_10 [1] : vector<8x8xf32> to vector<8xf32>
    %21 = vector.shape_cast %20 : vector<8xf32> to vector<8x1xf32>
    %22 = tpu.reciprocal %21 {approx = true} : vector<8x1xf32> -> vector<8x1xf32>
    %23 = vector.broadcast %22 : vector<8x1xf32> to vector<8x8xf32>
    %24 = arith.mulf %19, %23 : vector<8x8xf32>
    %cst_11 = arith.constant dense<0.000000e+00> : vector<8x16xf32>
    %25 = tpu.matmul %24, %13, %cst_11 {dimension_numbers = #tpu.dot_dimension_numbers<[1], [0], [0], [1], [0, 0, 1, 1], [], []>} : vector<8x8xf32>, vector<8x16xf32>, vector<8x16xf32> -> vector<8x16xf32>
    %26 = vector.extract_strided_slice %10 {offsets = [0, 16], sizes = [8, 16], strides = [1, 1]} : vector<8x96xf32> to vector<8x16xf32>
    %27 = vector.extract_strided_slice %10 {offsets = [0, 48], sizes = [8, 16], strides = [1, 1]} : vector<8x96xf32> to vector<8x16xf32>
    %28 = vector.extract_strided_slice %10 {offsets = [0, 80], sizes = [8, 16], strides = [1, 1]} : vector<8x96xf32> to vector<8x16xf32>
    %cst_12 = arith.constant dense<0.000000e+00> : vector<8x8xf32>
    %29 = tpu.matmul %26, %27, %cst_12 {dimension_numbers = #tpu.dot_dimension_numbers<[1], [1], [0], [0], [0, 0, 1, 0], [], []>} : vector<8x16xf32>, vector<8x16xf32>, vector<8x8xf32> -> vector<8x8xf32>
    %cst_13 = arith.constant dense<0xFF800000> : vector<8xf32>
    %30 = vector.multi_reduction <maximumf>, %29, %cst_13 [1] : vector<8x8xf32> to vector<8xf32>
    %31 = vector.shape_cast %30 : vector<8xf32> to vector<8x1xf32>
    %32 = vector.broadcast %31 : vector<8x1xf32> to vector<8x8xf32>
    %33 = arith.subf %29, %32 : vector<8x8xf32>
    %34 = math.exp %33 : vector<8x8xf32>
    %cst_14 = arith.constant dense<0.000000e+00> : vector<8xf32>
    %35 = vector.multi_reduction <add>, %34, %cst_14 [1] : vector<8x8xf32> to vector<8xf32>
    %36 = vector.shape_cast %35 : vector<8xf32> to vector<8x1xf32>
    %37 = tpu.reciprocal %36 {approx = true} : vector<8x1xf32> -> vector<8x1xf32>
    %38 = vector.broadcast %37 : vector<8x1xf32> to vector<8x8xf32>
    %39 = arith.mulf %34, %38 : vector<8x8xf32>
    %cst_15 = arith.constant dense<0.000000e+00> : vector<8x16xf32>
    %40 = tpu.matmul %39, %28, %cst_15 {dimension_numbers = #tpu.dot_dimension_numbers<[1], [0], [0], [1], [0, 0, 1, 1], [], []>} : vector<8x8xf32>, vector<8x16xf32>, vector<8x16xf32> -> vector<8x16xf32>
    %41 = tpu.concatenate %25, %40 in 1 : vector<8x16xf32>, vector<8x16xf32> -> vector<8x32xf32>
    %c0_16 = arith.constant 0 : index
    %c0_17 = arith.constant 0 : index
    %c0_18 = arith.constant 0 : index
    %42 = vector.load %arg9[%c0_16, %c0_17, %c0_18] : memref<1x32x32xf32, #tpu.memory_space<vmem>>, vector<1x32x32xf32>
    %43 = vector.shape_cast %42 : vector<1x32x32xf32> to vector<32x32xf32>
    %cst_19 = arith.constant dense<0.000000e+00> : vector<8x32xf32>
    %44 = tpu.matmul %41, %43, %cst_19 {dimension_numbers = #tpu.dot_dimension_numbers<[1], [0], [0], [1], [0, 0, 1, 1], [], []>} : vector<8x32xf32>, vector<32x32xf32>, vector<8x32xf32> -> vector<8x32xf32>
    %c0_20 = arith.constant 0 : index
    %c0_21 = arith.constant 0 : index
    %c0_22 = arith.constant 0 : index
    %45 = vector.load %arg10[%c0_20, %c0_21, %c0_22] : memref<1x1x32xf32, #tpu.memory_space<vmem>>, vector<1x1x32xf32>
    %46 = vector.shape_cast %45 : vector<1x1x32xf32> to vector<1x32xf32>
    %47 = vector.broadcast %46 : vector<1x32xf32> to vector<8x32xf32>
    %48 = arith.addf %44, %47 : vector<8x32xf32>
    %49 = arith.addf %3, %48 : vector<8x32xf32>
    %c0_23 = arith.constant 0 : index
    %c0_24 = arith.constant 0 : index
    %c0_25 = arith.constant 0 : index
    %50 = vector.load %arg11[%c0_23, %c0_24, %c0_25] : memref<1x1x32xf32, #tpu.memory_space<vmem>>, vector<1x1x32xf32>
    %51 = vector.shape_cast %50 : vector<1x1x32xf32> to vector<1x32xf32>
    %c0_26 = arith.constant 0 : index
    %c0_27 = arith.constant 0 : index
    %c0_28 = arith.constant 0 : index
    %52 = vector.load %arg12[%c0_26, %c0_27, %c0_28] : memref<1x1x32xf32, #tpu.memory_space<vmem>>, vector<1x1x32xf32>
    %53 = vector.shape_cast %52 : vector<1x1x32xf32> to vector<1x32xf32>
    %cst_29 = arith.constant dense<0.000000e+00> : vector<8xf32>
    %54 = vector.multi_reduction <add>, %49, %cst_29 [1] : vector<8x32xf32> to vector<8xf32>
    %55 = vector.shape_cast %54 : vector<8xf32> to vector<8x1xf32>
    %cst_30 = arith.constant 3.200000e+01 : f32
    %56 = vector.broadcast %cst_30 : f32 to vector<8x1xf32>
    %57 = arith.divf %55, %56 : vector<8x1xf32>
    %58 = vector.broadcast %57 : vector<8x1xf32> to vector<8x32xf32>
    %59 = arith.subf %49, %58 : vector<8x32xf32>
    %60 = arith.mulf %59, %59 : vector<8x32xf32>
    %cst_31 = arith.constant dense<0.000000e+00> : vector<8xf32>
    %61 = vector.multi_reduction <add>, %60, %cst_31 [1] : vector<8x32xf32> to vector<8xf32>
    %62 = vector.shape_cast %61 : vector<8xf32> to vector<8x1xf32>
    %cst_32 = arith.constant 3.200000e+01 : f32
    %63 = vector.broadcast %cst_32 : f32 to vector<8x1xf32>
    %64 = arith.divf %62, %63 : vector<8x1xf32>
    %cst_33 = arith.constant 9.99999996E-13 : f32
    %65 = vector.broadcast %cst_33 : f32 to vector<8x1xf32>
    %66 = arith.addf %64, %65 : vector<8x1xf32>
    %67 = math.rsqrt %66 : vector<8x1xf32>
    %68 = vector.broadcast %67 : vector<8x1xf32> to vector<8x32xf32>
    %69 = arith.mulf %59, %68 : vector<8x32xf32>
    %70 = vector.broadcast %51 : vector<1x32xf32> to vector<8x32xf32>
    %71 = arith.mulf %69, %70 : vector<8x32xf32>
    %72 = vector.broadcast %53 : vector<1x32xf32> to vector<8x32xf32>
    %73 = arith.addf %71, %72 : vector<8x32xf32>
    %c0_34 = arith.constant 0 : index
    %c0_35 = arith.constant 0 : index
    %c0_36 = arith.constant 0 : index
    %74 = vector.load %arg13[%c0_34, %c0_35, %c0_36] : memref<1x32x64xf32, #tpu.memory_space<vmem>>, vector<1x32x64xf32>
    %75 = vector.shape_cast %74 : vector<1x32x64xf32> to vector<32x64xf32>
    %cst_37 = arith.constant dense<0.000000e+00> : vector<8x64xf32>
    %76 = tpu.matmul %73, %75, %cst_37 {dimension_numbers = #tpu.dot_dimension_numbers<[1], [0], [0], [1], [0, 0, 1, 1], [], []>} : vector<8x32xf32>, vector<32x64xf32>, vector<8x64xf32> -> vector<8x64xf32>
    %c0_38 = arith.constant 0 : index
    %c0_39 = arith.constant 0 : index
    %c0_40 = arith.constant 0 : index
    %77 = vector.load %arg14[%c0_38, %c0_39, %c0_40] : memref<1x1x64xf32, #tpu.memory_space<vmem>>, vector<1x1x64xf32>
    %78 = vector.shape_cast %77 : vector<1x1x64xf32> to vector<1x64xf32>
    %79 = vector.broadcast %78 : vector<1x64xf32> to vector<8x64xf32>
    %80 = arith.addf %76, %79 : vector<8x64xf32>
    %cst_41 = arith.constant 5.000000e-01 : f32
    %81 = vector.broadcast %cst_41 : f32 to vector<8x64xf32>
    %82 = arith.mulf %81, %80 : vector<8x64xf32>
    %cst_42 = arith.constant 0.707106769 : f32
    %83 = vector.broadcast %cst_42 : f32 to vector<8x64xf32>
    %84 = arith.mulf %80, %83 : vector<8x64xf32>
    %85 = math.erf %84 : vector<8x64xf32>
    %cst_43 = arith.constant 1.000000e+00 : f32
    %86 = vector.broadcast %cst_43 : f32 to vector<8x64xf32>
    %87 = arith.addf %86, %85 : vector<8x64xf32>
    %88 = arith.mulf %82, %87 : vector<8x64xf32>
    %c0_44 = arith.constant 0 : index
    %c0_45 = arith.constant 0 : index
    %c0_46 = arith.constant 0 : index
    %89 = vector.load %arg15[%c0_44, %c0_45, %c0_46] : memref<1x64x32xf32, #tpu.memory_space<vmem>>, vector<1x64x32xf32>
    %90 = vector.shape_cast %89 : vector<1x64x32xf32> to vector<64x32xf32>
    %cst_47 = arith.constant dense<0.000000e+00> : vector<8x32xf32>
    %91 = tpu.matmul %88, %90, %cst_47 {dimension_numbers = #tpu.dot_dimension_numbers<[1], [0], [0], [1], [0, 0, 1, 1], [], []>} : vector<8x64xf32>, vector<64x32xf32>, vector<8x32xf32> -> vector<8x32xf32>
    %c0_48 = arith.constant 0 : index
    %c0_49 = arith.constant 0 : index
    %c0_50 = arith.constant 0 : index
    %92 = vector.load %arg16[%c0_48, %c0_49, %c0_50] : memref<1x1x32xf32, #tpu.memory_space<vmem>>, vector<1x1x32xf32>
    %93 = vector.shape_cast %92 : vector<1x1x32xf32> to vector<1x32xf32>
    %94 = vector.broadcast %93 : vector<1x32xf32> to vector<8x32xf32>
    %95 = arith.addf %91, %94 : vector<8x32xf32>
    %96 = arith.addf %73, %95 : vector<8x32xf32>
    %c0_51 = arith.constant 0 : index
    %c0_52 = arith.constant 0 : index
    %c0_53 = arith.constant 0 : index
    %97 = vector.load %arg17[%c0_51, %c0_52, %c0_53] : memref<1x1x32xf32, #tpu.memory_space<vmem>>, vector<1x1x32xf32>
    %98 = vector.shape_cast %97 : vector<1x1x32xf32> to vector<1x32xf32>
    %c0_54 = arith.constant 0 : index
    %c0_55 = arith.constant 0 : index
    %c0_56 = arith.constant 0 : index
    %99 = vector.load %arg18[%c0_54, %c0_55, %c0_56] : memref<1x1x32xf32, #tpu.memory_space<vmem>>, vector<1x1x32xf32>
    %100 = vector.shape_cast %99 : vector<1x1x32xf32> to vector<1x32xf32>
    %cst_57 = arith.constant dense<0.000000e+00> : vector<8xf32>
    %101 = vector.multi_reduction <add>, %96, %cst_57 [1] : vector<8x32xf32> to vector<8xf32>
    %102 = vector.shape_cast %101 : vector<8xf32> to vector<8x1xf32>
    %cst_58 = arith.constant 3.200000e+01 : f32
    %103 = vector.broadcast %cst_58 : f32 to vector<8x1xf32>
    %104 = arith.divf %102, %103 : vector<8x1xf32>
    %105 = vector.broadcast %104 : vector<8x1xf32> to vector<8x32xf32>
    %106 = arith.subf %96, %105 : vector<8x32xf32>
    %107 = arith.mulf %106, %106 : vector<8x32xf32>
    %cst_59 = arith.constant dense<0.000000e+00> : vector<8xf32>
    %108 = vector.multi_reduction <add>, %107, %cst_59 [1] : vector<8x32xf32> to vector<8xf32>
    %109 = vector.shape_cast %108 : vector<8xf32> to vector<8x1xf32>
    %cst_60 = arith.constant 3.200000e+01 : f32
    %110 = vector.broadcast %cst_60 : f32 to vector<8x1xf32>
    %111 = arith.divf %109, %110 : vector<8x1xf32>
    %cst_61 = arith.constant 9.99999996E-13 : f32
    %112 = vector.broadcast %cst_61 : f32 to vector<8x1xf32>
    %113 = arith.addf %111, %112 : vector<8x1xf32>
    %114 = math.rsqrt %113 : vector<8x1xf32>
    %115 = vector.broadcast %114 : vector<8x1xf32> to vector<8x32xf32>
    %116 = arith.mulf %106, %115 : vector<8x32xf32>
    %117 = vector.broadcast %98 : vector<1x32xf32> to vector<8x32xf32>
    %118 = arith.mulf %116, %117 : vector<8x32xf32>
    %119 = vector.broadcast %100 : vector<1x32xf32> to vector<8x32xf32>
    %120 = arith.addf %118, %119 : vector<8x32xf32>
    %c0_62 = arith.constant 0 : index
    %c0_63 = arith.constant 0 : index
    %121 = vector.load %arg20[%c0_62, %c0_63] : memref<8x32xf32, #tpu.memory_space<vmem>>, vector<8x32xf32>
    tpu.vector_store %arg20[%c0_62, %c0_63], %120 {strides = array<i32>} : memref<8x32xf32, #tpu.memory_space<vmem>>, vector<8x32xf32>,
    %c1_i32 = arith.constant 1 : i32
    %122 = arith.cmpi eq, %arg1, %c1_i32 : i32
    %123 = arith.extui %122 : i1 to i32
    %c0_i32_64 = arith.constant 0 : i32
    %124 = arith.cmpi ne, %123, %c0_i32_64 : i32
    scf.if %124 {
      %c0_65 = arith.constant 0 : index
      %c0_66 = arith.constant 0 : index
      %125 = vector.load %arg19[%c0_65, %c0_66] : memref<8x32xf32, #tpu.memory_space<vmem>>, vector<8x32xf32>
      tpu.vector_store %arg19[%c0_65, %c0_66], %120 {strides = array<i32>} : memref<8x32xf32, #tpu.memory_space<vmem>>, vector<8x32xf32>,
    } else {
    }
    return
  }
  func.func @transform_0(%arg0: i32, %arg1: i32) -> (i32, i32) {
    %c0_i32 = arith.constant 0 : i32
    %c0_i32_0 = arith.constant 0 : i32
    return %arg0, %c0_i32 : i32, i32
  }
  func.func @transform_1(%arg0: i32, %arg1: i32) -> (i32, i32) {
    %c0_i32 = arith.constant 0 : i32
    %c0_i32_0 = arith.constant 0 : i32
    %c0_i32_1 = arith.constant 0 : i32
    return %c0_i32, %c0_i32_0 : i32, i32
  }
  func.func @transform_2(%arg0: i32, %arg1: i32) -> (i32, i32) {
    %c0_i32 = arith.constant 0 : i32
    %c0_i32_0 = arith.constant 0 : i32
    %c0_i32_1 = arith.constant 0 : i32
    return %c0_i32, %c0_i32_0 : i32, i32
  }
  func.func @transform_3(%arg0: i32, %arg1: i32) -> (i32, i32) {
    %c0_i32 = arith.constant 0 : i32
    %c0_i32_0 = arith.constant 0 : i32
    %c0_i32_1 = arith.constant 0 : i32
    return %c0_i32, %c0_i32_0 : i32, i32
  }
  func.func @transform_4(%arg0: i32, %arg1: i32) -> (i32, i32) {
    %c0_i32 = arith.constant 0 : i32
    %c0_i32_0 = arith.constant 0 : i32
    %c0_i32_1 = arith.constant 0 : i32
    return %c0_i32, %c0_i32_0 : i32, i32
  }
  func.func @transform_5(%arg0: i32, %arg1: i32) -> (i32, i32, i32) {
    %c0_i32 = arith.constant 0 : i32
    %c0_i32_0 = arith.constant 0 : i32
    %c0_i32_1 = arith.constant 0 : i32
    return %arg1, %c0_i32, %c0_i32_0 : i32, i32, i32
  }
  func.func @transform_6(%arg0: i32, %arg1: i32) -> (i32, i32, i32) {
    %c0_i32 = arith.constant 0 : i32
    %c0_i32_0 = arith.constant 0 : i32
    %c0_i32_1 = arith.constant 0 : i32
    return %arg1, %c0_i32, %c0_i32_0 : i32, i32, i32
  }
  func.func @transform_7(%arg0: i32, %arg1: i32) -> (i32, i32, i32) {
    %c0_i32 = arith.constant 0 : i32
    %c0_i32_0 = arith.constant 0 : i32
    %c0_i32_1 = arith.constant 0 : i32
    return %arg1, %c0_i32, %c0_i32_0 : i32, i32, i32
  }
  func.func @transform_8(%arg0: i32, %arg1: i32) -> (i32, i32, i32) {
    %c0_i32 = arith.constant 0 : i32
    %c0_i32_0 = arith.constant 0 : i32
    %c0_i32_1 = arith.constant 0 : i32
    return %arg1, %c0_i32, %c0_i32_0 : i32, i32, i32
  }
  func.func @transform_9(%arg0: i32, %arg1: i32) -> (i32, i32, i32) {
    %c0_i32 = arith.constant 0 : i32
    %c0_i32_0 = arith.constant 0 : i32
    %c0_i32_1 = arith.constant 0 : i32
    return %arg1, %c0_i32, %c0_i32_0 : i32, i32, i32
  }
  func.func @transform_10(%arg0: i32, %arg1: i32) -> (i32, i32, i32) {
    %c0_i32 = arith.constant 0 : i32
    %c0_i32_0 = arith.constant 0 : i32
    %c0_i32_1 = arith.constant 0 : i32
    return %arg1, %c0_i32, %c0_i32_0 : i32, i32, i32
  }
  func.func @transform_11(%arg0: i32, %arg1: i32) -> (i32, i32, i32) {
    %c0_i32 = arith.constant 0 : i32
    %c0_i32_0 = arith.constant 0 : i32
    %c0_i32_1 = arith.constant 0 : i32
    return %arg1, %c0_i32, %c0_i32_0 : i32, i32, i32
  }
  func.func @transform_12(%arg0: i32, %arg1: i32) -> (i32, i32, i32) {
    %c0_i32 = arith.constant 0 : i32
    %c0_i32_0 = arith.constant 0 : i32
    %c0_i32_1 = arith.constant 0 : i32
    return %arg1, %c0_i32, %c0_i32_0 : i32, i32, i32
  }
  func.func @transform_13(%arg0: i32, %arg1: i32) -> (i32, i32, i32) {
    %c0_i32 = arith.constant 0 : i32
    %c0_i32_0 = arith.constant 0 : i32
    %c0_i32_1 = arith.constant 0 : i32
    return %arg1, %c0_i32, %c0_i32_0 : i32, i32, i32
  }
  func.func @transform_14(%arg0: i32, %arg1: i32) -> (i32, i32, i32) {
    %c0_i32 = arith.constant 0 : i32
    %c0_i32_0 = arith.constant 0 : i32
    %c0_i32_1 = arith.constant 0 : i32
    return %arg1, %c0_i32, %c0_i32_0 : i32, i32, i32
  }
  func.func @transform_15(%arg0: i32, %arg1: i32) -> (i32, i32, i32) {
    %c0_i32 = arith.constant 0 : i32
    %c0_i32_0 = arith.constant 0 : i32
    %c0_i32_1 = arith.constant 0 : i32
    return %arg1, %c0_i32, %c0_i32_0 : i32, i32, i32
  }
  func.func @transform_16(%arg0: i32, %arg1: i32) -> (i32, i32, i32) {
    %c0_i32 = arith.constant 0 : i32
    %c0_i32_0 = arith.constant 0 : i32
    %c0_i32_1 = arith.constant 0 : i32
    return %arg1, %c0_i32, %c0_i32_0 : i32, i32, i32
  }
  func.func @transform_17(%arg0: i32, %arg1: i32) -> (i32, i32) {
    %c0_i32 = arith.constant 0 : i32
    %c0_i32_0 = arith.constant 0 : i32
    return %arg0, %c0_i32 : i32, i32
  }
}

</mosaic_0001>

<llo_original>
// kernel: get_bert_forward.1
$region0: #{get_bert_forward.1}
  #allocation0 [shape = 'u32[]', space=smem, size = 0x4, offset = 0x4, fixed_abs, tag = 'smem constant byte address 0x4 - core index']
  #allocation1 [shape = 'u32[144,128]{1,0:T(1,128)}', space=vmem, size = 0x12000, scoped, tag = 'internal scratch']
  #allocation2 [shape = 'f32[8,32]{1,0:T(8,128)}', space=vmem, size = 0x1000, scoped, tag = 'scratch operand']
  %s0 = inlined_call_operand.vmem [shape: s32[16,1], index: 0, kind: input, shape index: {}]
  %s1 = inlined_call_operand.vmem [shape: f32[8,32], index: 1, kind: input, shape index: {}]
  %s2 = inlined_call_operand.vmem [shape: f32[64,32], index: 2, kind: input, shape index: {}]
  %s3 = inlined_call_operand.vmem [shape: f32[1,32], index: 3, kind: input, shape index: {}]
  %s4 = inlined_call_operand.vmem [shape: f32[1,32], index: 4, kind: input, shape index: {}]
  %s5 = inlined_call_operand.vmem [shape: f32[2,32,96], index: 5, kind: input, shape index: {}]
  %s6 = inlined_call_operand.vmem [shape: f32[2,1,96], index: 6, kind: input, shape index: {}]
  %s7 = inlined_call_operand.vmem [shape: f32[2,32,32], index: 7, kind: input, shape index: {}]
  %s8 = inlined_call_operand.vmem [shape: f32[2,1,32], index: 8, kind: input, shape index: {}]
  %s9 = inlined_call_operand.vmem [shape: f32[2,1,32], index: 9, kind: input, shape index: {}]
  %s10 = inlined_call_operand.vmem [shape: f32[2,1,32], index: 10, kind: input, shape index: {}]
  %s11 = inlined_call_operand.vmem [shape: f32[2,32,64], index: 11, kind: input, shape index: {}]
  %s12 = inlined_call_operand.vmem [shape: f32[2,1,64], index: 12, kind: input, shape index: {}]
  %s13 = inlined_call_operand.vmem [shape: f32[2,64,32], index: 13, kind: input, shape index: {}]
  %s14 = inlined_call_operand.vmem [shape: f32[2,1,32], index: 14, kind: input, shape index: {}]
  %s15 = inlined_call_operand.vmem [shape: f32[2,1,32], index: 15, kind: input, shape index: {}]
  %s16 = inlined_call_operand.vmem [shape: f32[2,1,32], index: 16, kind: input, shape index: {}]
  %s17 = inlined_call_operand.hbm [shape: f32[16,32], index: 17, kind: output, shape index: {}]
  %s18 = sld [smem:[#allocation0]]
  $region109: #{get_bert_forward.1} parent=0
    _
  %s20 = ssub.s32 1, %s18
  %s21 = scalar_select 0, %s20, %s18
  $region1: #{get_bert_forward.1} parent=0
    #allocation3 [shape = 'u8[8192]{0}', space=vmem, size = 0x2000, scoped, tag = 'output window, operand 0']
    #allocation4 [shape = 's32[2]{0}', space=sflag, size = 0x8, scoped, tag = 'scoped memory for get_bert_forward.1']
    %22 = vsyncpa [#allocation4], 0
    %s23 = scalar_lea.sflag [#allocation4], 1
    %24 = vsyncpa %s23, 0
    loop: start=0, step=1, limit=6
    $region2: #{get_bert_forward.1} parent=1 // loop_pre_header
      _
    $region3: #{get_bert_forward.1} parent=1 // loop_header
      %s26 = sphi 0, %s30
      %p27 = scmp.ge.s32.totalorder %s26, 6
      %s33 = sphi 0, %s45
      %s34 = sphi 0, %s41
      %s35 = sphi 0, %s33
      %s36 = sphi 0, %s34
      %s37 = sphi 0, %s35
      %s38 = sphi 0, %s36
      %s48 = sphi 0, %s50
      %s51 = sphi 0, %s48
      %s52 = sphi 0, %s51
      %s68 = sphi 0, %s52
      %s72 = sphi 0, %s72
      %s74 = sphi 0, %s72
      %s75 = sphi 0, %s74
      %s89 = sphi 0, %s75
      %s93 = sphi 0, %s93
      %s95 = sphi 0, %s93
      %s96 = sphi 0, %s95
      %s110 = sphi 0, %s96
      %s114 = sphi 0, %s114
      %s116 = sphi 0, %s114
      %s117 = sphi 0, %s116
      %s131 = sphi 0, %s117
      %s135 = sphi 0, %s135
      %s137 = sphi 0, %s135
      %s138 = sphi 0, %s137
      %s152 = sphi 0, %s138
      %s158 = sphi 0, %s160
      %s161 = sphi 0, %s158
      %s162 = sphi 0, %s161
      %s178 = sphi 0, %s162
      %s184 = sphi 0, %s186
      %s187 = sphi 0, %s184
      %s188 = sphi 0, %s187
      %s204 = sphi 0, %s188
      %s210 = sphi 0, %s212
      %s213 = sphi 0, %s210
      %s214 = sphi 0, %s213
      %s230 = sphi 0, %s214
      %s236 = sphi 0, %s238
      %s239 = sphi 0, %s236
      %s240 = sphi 0, %s239
      %s256 = sphi 0, %s240
      %s262 = sphi 0, %s264
      %s265 = sphi 0, %s262
      %s266 = sphi 0, %s265
      %s282 = sphi 0, %s266
      %s288 = sphi 0, %s290
      %s291 = sphi 0, %s288
      %s292 = sphi 0, %s291
      %s308 = sphi 0, %s292
      %s314 = sphi 0, %s316
      %s317 = sphi 0, %s314
      %s318 = sphi 0, %s317
      %s334 = sphi 0, %s318
      %s340 = sphi 0, %s342
      %s343 = sphi 0, %s340
      %s344 = sphi 0, %s343
      %s360 = sphi 0, %s344
      %s366 = sphi 0, %s368
      %s369 = sphi 0, %s366
      %s370 = sphi 0, %s369
      %s386 = sphi 0, %s370
      %s392 = sphi 0, %s394
      %s395 = sphi 0, %s392
      %s396 = sphi 0, %s395
      %s412 = sphi 0, %s396
      %s418 = sphi 0, %s420
      %s421 = sphi 0, %s418
      %s422 = sphi 0, %s421
      %s438 = sphi 0, %s422
      %s444 = sphi 0, %s446
      %s447 = sphi 0, %s444
      %s448 = sphi 0, %s447
      %s464 = sphi 0, %s448
      %s470 = sphi 0, %s472
      %s473 = sphi 0, %s470
      %s474 = sphi 0, %s473
      %s490 = sphi 0, %s474
    $region4: #{get_bert_forward.1} parent=1 // loop_header_branch
      %29 = sbr.rel (%p27) target = $region8
    $region5: #{get_bert_forward.1} parent=1 // loop_body
      %s31 = ssub.s32 %s26, 1
      %s32 = ssub.s32 %s26, 2
      %s39 = sadd.s32 1, %s34
      %p40 = scmp.ge.s32.totalorder %s39, 2
      %s41 = scalar_select %p40, 0, %s39
      %s42 = sadd.s32 1, %s33
      %s43 = scalar_select %p40, %s42, %s33
      %p44 = scmp.ge.s32.totalorder %s43, 2
      %s45 = scalar_select %p44, 0, %s43
      %s46 = ssub.s32 %s33, %s45
      %p47 = scmp.eq.s32.totalorder %s46, 0
      %s49 = sadd.s32 %s48, 1
      %s50 = scalar_select %p47, %s48, %s49
      %p53 = pneg %p47
      %p54 = scmp.eq.s32.totalorder %s26, 3
      %p55 = por %p53, %p54
      %p56 = scmp.ne.s32.totalorder %s48, %s51
      %p57 = scmp.eq.s32.totalorder %s26, 0
      %p58 = por %p56, %p57
      %p59 = scmp.ne.s32.totalorder %s48, %s51
      %p60 = scmp.eq.s32.totalorder %s31, 3
      %p61 = por %p59, %p60
      %p62 = scmp.ne.s32.totalorder %s51, %s52
      %p63 = scmp.eq.s32.totalorder %s31, 0
      %p64 = por %p62, %p63
      %p65 = scmp.ne.s32.totalorder %s51, %s52
      %p66 = scmp.eq.s32.totalorder %s32, 3
      %p67 = por %p65, %p66
      %p69 = scmp.ne.s32.totalorder %s52, %s68
      %p70 = scmp.eq.s32.totalorder %s32, 0
      %p71 = por %p69, %p70
      %s73 = sadd.s32 %s72, 1
      %p76 = scmp.eq.s32.totalorder %s26, 3
      %p77 = scmp.ne.s32.totalorder %s72, %s74
      %p78 = scmp.eq.s32.totalorder %s26, 0
      %p79 = por %p77, %p78
      %p80 = scmp.ne.s32.totalorder %s72, %s74
      %p81 = scmp.eq.s32.totalorder %s31, 3
      %p82 = por %p80, %p81
      %p83 = scmp.ne.s32.totalorder %s74, %s75
      %p84 = scmp.eq.s32.totalorder %s31, 0
      %p85 = por %p83, %p84
      %p86 = scmp.ne.s32.totalorder %s74, %s75
      %p87 = scmp.eq.s32.totalorder %s32, 3
      %p88 = por %p86, %p87
      %p90 = scmp.ne.s32.totalorder %s75, %s89
      %p91 = scmp.eq.s32.totalorder %s32, 0
      %p92 = por %p90, %p91
      %s94 = sadd.s32 %s93, 1
      %p97 = scmp.eq.s32.totalorder %s26, 3
      %p98 = scmp.ne.s32.totalorder %s93, %s95
      %p99 = scmp.eq.s32.totalorder %s26, 0
      %p100 = por %p98, %p99
      %p101 = scmp.ne.s32.totalorder %s93, %s95
      %p102 = scmp.eq.s32.totalorder %s31, 3
      %p103 = por %p101, %p102
      %p104 = scmp.ne.s32.totalorder %s95, %s96
      %p105 = scmp.eq.s32.totalorder %s31, 0
      %p106 = por %p104, %p105
      %p107 = scmp.ne.s32.totalorder %s95, %s96
      %p108 = scmp.eq.s32.totalorder %s32, 3
      %p109 = por %p107, %p108
      %p111 = scmp.ne.s32.totalorder %s96, %s110
      %p112 = scmp.eq.s32.totalorder %s32, 0
      %p113 = por %p111, %p112
      %s115 = sadd.s32 %s114, 1
      %p118 = scmp.eq.s32.totalorder %s26, 3
      %p119 = scmp.ne.s32.totalorder %s114, %s116
      %p120 = scmp.eq.s32.totalorder %s26, 0
      %p121 = por %p119, %p120
      %p122 = scmp.ne.s32.totalorder %s114, %s116
      %p123 = scmp.eq.s32.totalorder %s31, 3
      %p124 = por %p122, %p123
      %p125 = scmp.ne.s32.totalorder %s116, %s117
      %p126 = scmp.eq.s32.totalorder %s31, 0
      %p127 = por %p125, %p126
      %p128 = scmp.ne.s32.totalorder %s116, %s117
      %p129 = scmp.eq.s32.totalorder %s32, 3
      %p130 = por %p128, %p129
      %p132 = scmp.ne.s32.totalorder %s117, %s131
      %p133 = scmp.eq.s32.totalorder %s32, 0
      %p134 = por %p132, %p133
      %s136 = sadd.s32 %s135, 1
      %p139 = scmp.eq.s32.totalorder %s26, 3
      %p140 = scmp.ne.s32.totalorder %s135, %s137
      %p141 = scmp.eq.s32.totalorder %s26, 0
      %p142 = por %p140, %p141
      %p143 = scmp.ne.s32.totalorder %s135, %s137
      %p144 = scmp.eq.s32.totalorder %s31, 3
      %p145 = por %p143, %p144
      %p146 = scmp.ne.s32.totalorder %s137, %s138
      %p147 = scmp.eq.s32.totalorder %s31, 0
      %p148 = por %p146, %p147
      %p149 = scmp.ne.s32.totalorder %s137, %s138
      %p150 = scmp.eq.s32.totalorder %s32, 3
      %p151 = por %p149, %p150
      %p153 = scmp.ne.s32.totalorder %s138, %s152
      %p154 = scmp.eq.s32.totalorder %s32, 0
      %p155 = por %p153, %p154
      %s156 = ssub.s32 %s34, %s41
      %p157 = scmp.eq.s32.totalorder %s156, 0
      %s159 = sadd.s32 %s158, 1
      %s160 = scalar_select %p157, %s158, %s159
      %p163 = pneg %p157
      %p164 = scmp.eq.s32.totalorder %s26, 3
      %p165 = por %p163, %p164
      %p166 = scmp.ne.s32.totalorder %s158, %s161
      %p167 = scmp.eq.s32.totalorder %s26, 0
      %p168 = por %p166, %p167
      %p169 = scmp.ne.s32.totalorder %s158, %s161
      %p170 = scmp.eq.s32.totalorder %s31, 3
      %p171 = por %p169, %p170
      %p172 = scmp.ne.s32.totalorder %s161, %s162
      %p173 = scmp.eq.s32.totalorder %s31, 0
      %p174 = por %p172, %p173
      %p175 = scmp.ne.s32.totalorder %s161, %s162
      %p176 = scmp.eq.s32.totalorder %s32, 3
      %p177 = por %p175, %p176
      %p179 = scmp.ne.s32.totalorder %s162, %s178
      %p180 = scmp.eq.s32.totalorder %s32, 0
      %p181 = por %p179, %p180
      %s182 = ssub.s32 %s34, %s41
      %p183 = scmp.eq.s32.totalorder %s182, 0
      %s185 = sadd.s32 %s184, 1
      %s186 = scalar_select %p183, %s184, %s185
      %p189 = pneg %p183
      %p190 = scmp.eq.s32.totalorder %s26, 3
      %p191 = por %p189, %p190
      %p192 = scmp.ne.s32.totalorder %s184, %s187
      %p193 = scmp.eq.s32.totalorder %s26, 0
      %p194 = por %p192, %p193
      %p195 = scmp.ne.s32.totalorder %s184, %s187
      %p196 = scmp.eq.s32.totalorder %s31, 3
      %p197 = por %p195, %p196
      %p198 = scmp.ne.s32.totalorder %s187, %s188
      %p199 = scmp.eq.s32.totalorder %s31, 0
      %p200 = por %p198, %p199
      %p201 = scmp.ne.s32.totalorder %s187, %s188
      %p202 = scmp.eq.s32.totalorder %s32, 3
      %p203 = por %p201, %p202
      %p205 = scmp.ne.s32.totalorder %s188, %s204
      %p206 = scmp.eq.s32.totalorder %s32, 0
      %p207 = por %p205, %p206
      %s208 = ssub.s32 %s34, %s41
      %p209 = scmp.eq.s32.totalorder %s208, 0
      %s211 = sadd.s32 %s210, 1
      %s212 = scalar_select %p209, %s210, %s211
      %p215 = pneg %p209
      %p216 = scmp.eq.s32.totalorder %s26, 3
      %p217 = por %p215, %p216
      %p218 = scmp.ne.s32.totalorder %s210, %s213
      %p219 = scmp.eq.s32.totalorder %s26, 0
      %p220 = por %p218, %p219
      %p221 = scmp.ne.s32.totalorder %s210, %s213
      %p222 = scmp.eq.s32.totalorder %s31, 3
      %p223 = por %p221, %p222
      %p224 = scmp.ne.s32.totalorder %s213, %s214
      %p225 = scmp.eq.s32.totalorder %s31, 0
      %p226 = por %p224, %p225
      %p227 = scmp.ne.s32.totalorder %s213, %s214
      %p228 = scmp.eq.s32.totalorder %s32, 3
      %p229 = por %p227, %p228
      %p231 = scmp.ne.s32.totalorder %s214, %s230
      %p232 = scmp.eq.s32.totalorder %s32, 0
      %p233 = por %p231, %p232
      %s234 = ssub.s32 %s34, %s41
      %p235 = scmp.eq.s32.totalorder %s234, 0
      %s237 = sadd.s32 %s236, 1
      %s238 = scalar_select %p235, %s236, %s237
      %p241 = pneg %p235
      %p242 = scmp.eq.s32.totalorder %s26, 3
      %p243 = por %p241, %p242
      %p244 = scmp.ne.s32.totalorder %s236, %s239
      %p245 = scmp.eq.s32.totalorder %s26, 0
      %p246 = por %p244, %p245
      %p247 = scmp.ne.s32.totalorder %s236, %s239
      %p248 = scmp.eq.s32.totalorder %s31, 3
      %p249 = por %p247, %p248
      %p250 = scmp.ne.s32.totalorder %s239, %s240
      %p251 = scmp.eq.s32.totalorder %s31, 0
      %p252 = por %p250, %p251
      %p253 = scmp.ne.s32.totalorder %s239, %s240
      %p254 = scmp.eq.s32.totalorder %s32, 3
      %p255 = por %p253, %p254
      %p257 = scmp.ne.s32.totalorder %s240, %s256
      %p258 = scmp.eq.s32.totalorder %s32, 0
      %p259 = por %p257, %p258
      %s260 = ssub.s32 %s34, %s41
      %p261 = scmp.eq.s32.totalorder %s260, 0
      %s263 = sadd.s32 %s262, 1
      %s264 = scalar_select %p261, %s262, %s263
      %p267 = pneg %p261
      %p268 = scmp.eq.s32.totalorder %s26, 3
      %p269 = por %p267, %p268
      %p270 = scmp.ne.s32.totalorder %s262, %s265
      %p271 = scmp.eq.s32.totalorder %s26, 0
      %p272 = por %p270, %p271
      %p273 = scmp.ne.s32.totalorder %s262, %s265
      %p274 = scmp.eq.s32.totalorder %s31, 3
      %p275 = por %p273, %p274
      %p276 = scmp.ne.s32.totalorder %s265, %s266
      %p277 = scmp.eq.s32.totalorder %s31, 0
      %p278 = por %p276, %p277
      %p279 = scmp.ne.s32.totalorder %s265, %s266
      %p280 = scmp.eq.s32.totalorder %s32, 3
      %p281 = por %p279, %p280
      %p283 = scmp.ne.s32.totalorder %s266, %s282
      %p284 = scmp.eq.s32.totalorder %s32, 0
      %p285 = por %p283, %p284
      %s286 = ssub.s32 %s34, %s41
      %p287 = scmp.eq.s32.totalorder %s286, 0
      %s289 = sadd.s32 %s288, 1
      %s290 = scalar_select %p287, %s288, %s289
      %p293 = pneg %p287
      %p294 = scmp.eq.s32.totalorder %s26, 3
      %p295 = por %p293, %p294
      %p296 = scmp.ne.s32.totalorder %s288, %s291
      %p297 = scmp.eq.s32.totalorder %s26, 0
      %p298 = por %p296, %p297
      %p299 = scmp.ne.s32.totalorder %s288, %s291
      %p300 = scmp.eq.s32.totalorder %s31, 3
      %p301 = por %p299, %p300
      %p302 = scmp.ne.s32.totalorder %s291, %s292
      %p303 = scmp.eq.s32.totalorder %s31, 0
      %p304 = por %p302, %p303
      %p305 = scmp.ne.s32.totalorder %s291, %s292
      %p306 = scmp.eq.s32.totalorder %s32, 3
      %p307 = por %p305, %p306
      %p309 = scmp.ne.s32.totalorder %s292, %s308
      %p310 = scmp.eq.s32.totalorder %s32, 0
      %p311 = por %p309, %p310
      %s312 = ssub.s32 %s34, %s41
      %p313 = scmp.eq.s32.totalorder %s312, 0
      %s315 = sadd.s32 %s314, 1
      %s316 = scalar_select %p313, %s314, %s315
      %p319 = pneg %p313
      %p320 = scmp.eq.s32.totalorder %s26, 3
      %p321 = por %p319, %p320
      %p322 = scmp.ne.s32.totalorder %s314, %s317
      %p323 = scmp.eq.s32.totalorder %s26, 0
      %p324 = por %p322, %p323
      %p325 = scmp.ne.s32.totalorder %s314, %s317
      %p326 = scmp.eq.s32.totalorder %s31, 3
      %p327 = por %p325, %p326
      %p328 = scmp.ne.s32.totalorder %s317, %s318
      %p329 = scmp.eq.s32.totalorder %s31, 0
      %p330 = por %p328, %p329
      %p331 = scmp.ne.s32.totalorder %s317, %s318
      %p332 = scmp.eq.s32.totalorder %s32, 3
      %p333 = por %p331, %p332
      %p335 = scmp.ne.s32.totalorder %s318, %s334
      %p336 = scmp.eq.s32.totalorder %s32, 0
      %p337 = por %p335, %p336
      %s338 = ssub.s32 %s34, %s41
      %p339 = scmp.eq.s32.totalorder %s338, 0
      %s341 = sadd.s32 %s340, 1
      %s342 = scalar_select %p339, %s340, %s341
      %p345 = pneg %p339
      %p346 = scmp.eq.s32.totalorder %s26, 3
      %p347 = por %p345, %p346
      %p348 = scmp.ne.s32.totalorder %s340, %s343
      %p349 = scmp.eq.s32.totalorder %s26, 0
      %p350 = por %p348, %p349
      %p351 = scmp.ne.s32.totalorder %s340, %s343
      %p352 = scmp.eq.s32.totalorder %s31, 3
      %p353 = por %p351, %p352
      %p354 = scmp.ne.s32.totalorder %s343, %s344
      %p355 = scmp.eq.s32.totalorder %s31, 0
      %p356 = por %p354, %p355
      %p357 = scmp.ne.s32.totalorder %s343, %s344
      %p358 = scmp.eq.s32.totalorder %s32, 3
      %p359 = por %p357, %p358
      %p361 = scmp.ne.s32.totalorder %s344, %s360
      %p362 = scmp.eq.s32.totalorder %s32, 0
      %p363 = por %p361, %p362
      %s364 = ssub.s32 %s34, %s41
      %p365 = scmp.eq.s32.totalorder %s364, 0
      %s367 = sadd.s32 %s366, 1
      %s368 = scalar_select %p365, %s366, %s367
      %p371 = pneg %p365
      %p372 = scmp.eq.s32.totalorder %s26, 3
      %p373 = por %p371, %p372
      %p374 = scmp.ne.s32.totalorder %s366, %s369
      %p375 = scmp.eq.s32.totalorder %s26, 0
      %p376 = por %p374, %p375
      %p377 = scmp.ne.s32.totalorder %s366, %s369
      %p378 = scmp.eq.s32.totalorder %s31, 3
      %p379 = por %p377, %p378
      %p380 = scmp.ne.s32.totalorder %s369, %s370
      %p381 = scmp.eq.s32.totalorder %s31, 0
      %p382 = por %p380, %p381
      %p383 = scmp.ne.s32.totalorder %s369, %s370
      %p384 = scmp.eq.s32.totalorder %s32, 3
      %p385 = por %p383, %p384
      %p387 = scmp.ne.s32.totalorder %s370, %s386
      %p388 = scmp.eq.s32.totalorder %s32, 0
      %p389 = por %p387, %p388
      %s390 = ssub.s32 %s34, %s41
      %p391 = scmp.eq.s32.totalorder %s390, 0
      %s393 = sadd.s32 %s392, 1
      %s394 = scalar_select %p391, %s392, %s393
      %p397 = pneg %p391
      %p398 = scmp.eq.s32.totalorder %s26, 3
      %p399 = por %p397, %p398
      %p400 = scmp.ne.s32.totalorder %s392, %s395
      %p401 = scmp.eq.s32.totalorder %s26, 0
      %p402 = por %p400, %p401
      %p403 = scmp.ne.s32.totalorder %s392, %s395
      %p404 = scmp.eq.s32.totalorder %s31, 3
      %p405 = por %p403, %p404
      %p406 = scmp.ne.s32.totalorder %s395, %s396
      %p407 = scmp.eq.s32.totalorder %s31, 0
      %p408 = por %p406, %p407
      %p409 = scmp.ne.s32.totalorder %s395, %s396
      %p410 = scmp.eq.s32.totalorder %s32, 3
      %p411 = por %p409, %p410
      %p413 = scmp.ne.s32.totalorder %s396, %s412
      %p414 = scmp.eq.s32.totalorder %s32, 0
      %p415 = por %p413, %p414
      %s416 = ssub.s32 %s34, %s41
      %p417 = scmp.eq.s32.totalorder %s416, 0
      %s419 = sadd.s32 %s418, 1
      %s420 = scalar_select %p417, %s418, %s419
      %p423 = pneg %p417
      %p424 = scmp.eq.s32.totalorder %s26, 3
      %p425 = por %p423, %p424
      %p426 = scmp.ne.s32.totalorder %s418, %s421
      %p427 = scmp.eq.s32.totalorder %s26, 0
      %p428 = por %p426, %p427
      %p429 = scmp.ne.s32.totalorder %s418, %s421
      %p430 = scmp.eq.s32.totalorder %s31, 3
      %p431 = por %p429, %p430
      %p432 = scmp.ne.s32.totalorder %s421, %s422
      %p433 = scmp.eq.s32.totalorder %s31, 0
      %p434 = por %p432, %p433
      %p435 = scmp.ne.s32.totalorder %s421, %s422
      %p436 = scmp.eq.s32.totalorder %s32, 3
      %p437 = por %p435, %p436
      %p439 = scmp.ne.s32.totalorder %s422, %s438
      %p440 = scmp.eq.s32.totalorder %s32, 0
      %p441 = por %p439, %p440
      %s442 = ssub.s32 %s34, %s41
      %p443 = scmp.eq.s32.totalorder %s442, 0
      %s445 = sadd.s32 %s444, 1
      %s446 = scalar_select %p443, %s444, %s445
      %p449 = pneg %p443
      %p450 = scmp.eq.s32.totalorder %s26, 3
      %p451 = por %p449, %p450
      %p452 = scmp.ne.s32.totalorder %s444, %s447
      %p453 = scmp.eq.s32.totalorder %s26, 0
      %p454 = por %p452, %p453
      %p455 = scmp.ne.s32.totalorder %s444, %s447
      %p456 = scmp.eq.s32.totalorder %s31, 3
      %p457 = por %p455, %p456
      %p458 = scmp.ne.s32.totalorder %s447, %s448
      %p459 = scmp.eq.s32.totalorder %s31, 0
      %p460 = por %p458, %p459
      %p461 = scmp.ne.s32.totalorder %s447, %s448
      %p462 = scmp.eq.s32.totalorder %s32, 3
      %p463 = por %p461, %p462
      %p465 = scmp.ne.s32.totalorder %s448, %s464
      %p466 = scmp.eq.s32.totalorder %s32, 0
      %p467 = por %p465, %p466
      %s468 = ssub.s32 %s33, %s45
      %p469 = scmp.eq.s32.totalorder %s468, 0
      %s471 = sadd.s32 %s470, 1
      %s472 = scalar_select %p469, %s470, %s471
      %p475 = pneg %p469
      %p476 = scmp.eq.s32.totalorder %s26, 3
      %p477 = por %p475, %p476
      %p478 = scmp.ne.s32.totalorder %s470, %s473
      %p479 = scmp.eq.s32.totalorder %s26, 0
      %p480 = por %p478, %p479
      %p481 = scmp.ne.s32.totalorder %s470, %s473
      %p482 = scmp.eq.s32.totalorder %s31, 3
      %p483 = por %p481, %p482
      %p484 = scmp.ne.s32.totalorder %s473, %s474
      %p485 = scmp.eq.s32.totalorder %s31, 0
      %p486 = por %p484, %p485
      %p487 = scmp.ne.s32.totalorder %s473, %s474
      %p488 = scmp.eq.s32.totalorder %s32, 3
      %p489 = por %p487, %p488
      %p491 = scmp.ne.s32.totalorder %s474, %s490
      %p492 = scmp.eq.s32.totalorder %s32, 0
      %p493 = por %p491, %p492
      %p494 = scmp.le.s32.totalorder 1, %s26
      %p495 = scmp.lt.s32.totalorder %s26, 5
      %p496 = pnand %p494, %p495
      %p497 = pneg %p496
      // Predicated region
      $region9: #{get_bert_forward.1} parent=5 // pred_check
        _
      $region10: #{get_bert_forward.1} parent=5 // pred_check_branch
        %499 = sbr.rel (%p496) target = $region12
      $region11: #{get_bert_forward.1} parent=5 // pred_region
        %s500 = ssub.s32 %s26, 1
        // Predicated region
        $region13: #{get_bert_forward.1} parent=11 // pred_check
          %p501 = pneg %p85
        $region14: #{get_bert_forward.1} parent=11 // pred_check_branch
          %503 = sbr.rel (%p501) target = $region16
        $region15: #{get_bert_forward.1} parent=11 // pred_region
          _
        $region16: #{get_bert_forward.1} parent=11 // pred_fallthru
          _
        // Predicated region
        $region17: #{get_bert_forward.1} parent=11 // pred_check
          %p504 = pneg %p106
        $region18: #{get_bert_forward.1} parent=11 // pred_check_branch
          %506 = sbr.rel (%p504) target = $region20
        $region19: #{get_bert_forward.1} parent=11 // pred_region
          _
        $region20: #{get_bert_forward.1} parent=11 // pred_fallthru
          _
        // Predicated region
        $region21: #{get_bert_forward.1} parent=11 // pred_check
          %p507 = pneg %p127
        $region22: #{get_bert_forward.1} parent=11 // pred_check_branch
          %509 = sbr.rel (%p507) target = $region24
        $region23: #{get_bert_forward.1} parent=11 // pred_region
          _
        $region24: #{get_bert_forward.1} parent=11 // pred_fallthru
          _
        // Predicated region
        $region25: #{get_bert_forward.1} parent=11 // pred_check
          %p510 = pneg %p148
        $region26: #{get_bert_forward.1} parent=11 // pred_check_branch
          %512 = sbr.rel (%p510) target = $region28
        $region27: #{get_bert_forward.1} parent=11 // pred_region
          _
        $region28: #{get_bert_forward.1} parent=11 // pred_fallthru
          _
      $region12: #{get_bert_forward.1} parent=5 // pred_fallthru
        _
      %p513 = scmp.lt.s32.totalorder %s26, 4
      // Predicated region
      $region29: #{get_bert_forward.1} parent=5 // pred_check
        %p514 = pneg %p513
      $region30: #{get_bert_forward.1} parent=5 // pred_check_branch
        %516 = sbr.rel (%p514) target = $region32
      $region31: #{get_bert_forward.1} parent=5 // pred_region
        // Predicated region
        $region33: #{get_bert_forward.1} parent=31 // pred_check
          %p517 = pneg %p58
        $region34: #{get_bert_forward.1} parent=31 // pred_check_branch
          %519 = sbr.rel (%p517) target = $region36
        $region35: #{get_bert_forward.1} parent=31 // pred_region
          %p520 = scmp.lt.s32.totalorder %s33, 1
          %s521 = scalar_select %p520, %s33, 1
          %s522 = smul.addr %s521, 8
          %s523 = scalar_lea.vmem %s0, %s522
        $region36: #{get_bert_forward.1} parent=31 // pred_fallthru
          _
        // Predicated region
        $region37: #{get_bert_forward.1} parent=31 // pred_check
          %p524 = pneg %p168
        $region38: #{get_bert_forward.1} parent=31 // pred_check_branch
          %526 = sbr.rel (%p524) target = $region40
        $region39: #{get_bert_forward.1} parent=31 // pred_region
          %p527 = scmp.lt.s32.totalorder %s34, 1
          %s528 = scalar_select %p527, %s34, 1
          %s529 = smul.addr %s528, 4
          %s530 = smul.addr %s529, 8
          %s531 = scalar_lea.vmem %s5, %s530
        $region40: #{get_bert_forward.1} parent=31 // pred_fallthru
          _
        // Predicated region
        $region41: #{get_bert_forward.1} parent=31 // pred_check
          %p532 = pneg %p194
        $region42: #{get_bert_forward.1} parent=31 // pred_check_branch
          %534 = sbr.rel (%p532) target = $region44
        $region43: #{get_bert_forward.1} parent=31 // pred_region
          %p535 = scmp.lt.s32.totalorder %s34, 1
          %s536 = scalar_select %p535, %s34, 1
          %s537 = scalar_lea.vmem %s6, %s536
        $region44: #{get_bert_forward.1} parent=31 // pred_fallthru
          _
        // Predicated region
        $region45: #{get_bert_forward.1} parent=31 // pred_check
          %p538 = pneg %p220
        $region46: #{get_bert_forward.1} parent=31 // pred_check_branch
          %540 = sbr.rel (%p538) target = $region48
        $region47: #{get_bert_forward.1} parent=31 // pred_region
          %p541 = scmp.lt.s32.totalorder %s34, 1
          %s542 = scalar_select %p541, %s34, 1
          %s543 = smul.addr %s542, 4
          %s544 = smul.addr %s543, 8
          %s545 = scalar_lea.vmem %s7, %s544
        $region48: #{get_bert_forward.1} parent=31 // pred_fallthru
          _
        // Predicated region
        $region49: #{get_bert_forward.1} parent=31 // pred_check
          %p546 = pneg %p246
        $region50: #{get_bert_forward.1} parent=31 // pred_check_branch
          %548 = sbr.rel (%p546) target = $region52
        $region51: #{get_bert_forward.1} parent=31 // pred_region
          %p549 = scmp.lt.s32.totalorder %s34, 1
          %s550 = scalar_select %p549, %s34, 1
          %s551 = scalar_lea.vmem %s8, %s550
        $region52: #{get_bert_forward.1} parent=31 // pred_fallthru
          _
        // Predicated region
        $region53: #{get_bert_forward.1} parent=31 // pred_check
          %p552 = pneg %p272
        $region54: #{get_bert_forward.1} parent=31 // pred_check_branch
          %554 = sbr.rel (%p552) target = $region56
        $region55: #{get_bert_forward.1} parent=31 // pred_region
          %p555 = scmp.lt.s32.totalorder %s34, 1
          %s556 = scalar_select %p555, %s34, 1
          %s557 = scalar_lea.vmem %s9, %s556
        $region56: #{get_bert_forward.1} parent=31 // pred_fallthru
          _
        // Predicated region
        $region57: #{get_bert_forward.1} parent=31 // pred_check
          %p558 = pneg %p298
        $region58: #{get_bert_forward.1} parent=31 // pred_check_branch
          %560 = sbr.rel (%p558) target = $region60
        $region59: #{get_bert_forward.1} parent=31 // pred_region
          %p561 = scmp.lt.s32.totalorder %s34, 1
          %s562 = scalar_select %p561, %s34, 1
          %s563 = scalar_lea.vmem %s10, %s562
        $region60: #{get_bert_forward.1} parent=31 // pred_fallthru
          _
        // Predicated region
        $region61: #{get_bert_forward.1} parent=31 // pred_check
          %p564 = pneg %p324
        $region62: #{get_bert_forward.1} parent=31 // pred_check_branch
          %566 = sbr.rel (%p564) target = $region64
        $region63: #{get_bert_forward.1} parent=31 // pred_region
          %p567 = scmp.lt.s32.totalorder %s34, 1
          %s568 = scalar_select %p567, %s34, 1
          %s569 = smul.addr %s568, 4
          %s570 = smul.addr %s569, 8
          %s571 = scalar_lea.vmem %s11, %s570
        $region64: #{get_bert_forward.1} parent=31 // pred_fallthru
          _
        // Predicated region
        $region65: #{get_bert_forward.1} parent=31 // pred_check
          %p572 = pneg %p350
        $region66: #{get_bert_forward.1} parent=31 // pred_check_branch
          %574 = sbr.rel (%p572) target = $region68
        $region67: #{get_bert_forward.1} parent=31 // pred_region
          %p575 = scmp.lt.s32.totalorder %s34, 1
          %s576 = scalar_select %p575, %s34, 1
          %s577 = scalar_lea.vmem %s12, %s576
        $region68: #{get_bert_forward.1} parent=31 // pred_fallthru
          _
        // Predicated region
        $region69: #{get_bert_forward.1} parent=31 // pred_check
          %p578 = pneg %p376
        $region70: #{get_bert_forward.1} parent=31 // pred_check_branch
          %580 = sbr.rel (%p578) target = $region72
        $region71: #{get_bert_forward.1} parent=31 // pred_region
          %p581 = scmp.lt.s32.totalorder %s34, 1
          %s582 = scalar_select %p581, %s34, 1
          %s583 = smul.addr %s582, 8
          %s584 = smul.addr %s583, 8
          %s585 = scalar_lea.vmem %s13, %s584
        $region72: #{get_bert_forward.1} parent=31 // pred_fallthru
          _
        // Predicated region
        $region73: #{get_bert_forward.1} parent=31 // pred_check
          %p586 = pneg %p402
        $region74: #{get_bert_forward.1} parent=31 // pred_check_branch
          %588 = sbr.rel (%p586) target = $region76
        $region75: #{get_bert_forward.1} parent=31 // pred_region
          %p589 = scmp.lt.s32.totalorder %s34, 1
          %s590 = scalar_select %p589, %s34, 1
          %s591 = scalar_lea.vmem %s14, %s590
        $region76: #{get_bert_forward.1} parent=31 // pred_fallthru
          _
        // Predicated region
        $region77: #{get_bert_forward.1} parent=31 // pred_check
          %p592 = pneg %p428
        $region78: #{get_bert_forward.1} parent=31 // pred_check_branch
          %594 = sbr.rel (%p592) target = $region80
        $region79: #{get_bert_forward.1} parent=31 // pred_region
          %p595 = scmp.lt.s32.totalorder %s34, 1
          %s596 = scalar_select %p595, %s34, 1
          %s597 = scalar_lea.vmem %s15, %s596
        $region80: #{get_bert_forward.1} parent=31 // pred_fallthru
          _
        // Predicated region
        $region81: #{get_bert_forward.1} parent=31 // pred_check
          %p598 = pneg %p454
        $region82: #{get_bert_forward.1} parent=31 // pred_check_branch
          %600 = sbr.rel (%p598) target = $region84
        $region83: #{get_bert_forward.1} parent=31 // pred_region
          %p601 = scmp.lt.s32.totalorder %s34, 1
          %s602 = scalar_select %p601, %s34, 1
          %s603 = scalar_lea.vmem %s16, %s602
        $region84: #{get_bert_forward.1} parent=31 // pred_fallthru
          _
      $region32: #{get_bert_forward.1} parent=5 // pred_fallthru
        _
      %p604 = scmp.le.s32.totalorder 1, %s26
      %p605 = scmp.lt.s32.totalorder %s26, 5
      %p606 = pnand %p604, %p605
      %p607 = pneg %p606
      // Predicated region
      $region85: #{get_bert_forward.1} parent=5 // pred_check
        _
      $region86: #{get_bert_forward.1} parent=5 // pred_check_branch
        %609 = sbr.rel (%p606) target = $region88
      $region87: #{get_bert_forward.1} parent=5 // pred_region
        %s610 = ssub.s32 %s26, 1
        %p611 = scmp.lt.s32.totalorder %s35, 1
        %s612 = scalar_select %p611, %s35, 1
        %s613 = smul.addr %s612, 8
        %s614 = scalar_lea.vmem %s0, %s613
        %p615 = pneg %p64
        %p616 = pneg %p61
        %p617 = pneg %p85
        %p618 = pneg %p82
        %p619 = pneg %p106
        %p620 = pneg %p103
        %p621 = pneg %p127
        %p622 = pneg %p124
        %p623 = pneg %p148
        %p624 = pneg %p145
        %p625 = scmp.lt.s32.totalorder %s36, 1
        %s626 = scalar_select %p625, %s36, 1
        %s627 = smul.addr %s626, 4
        %s628 = smul.addr %s627, 8
        %s629 = scalar_lea.vmem %s5, %s628
        %p630 = pneg %p174
        %p631 = pneg %p171
        %p632 = scmp.lt.s32.totalorder %s36, 1
        %s633 = scalar_select %p632, %s36, 1
        %s634 = scalar_lea.vmem %s6, %s633
        %p635 = pneg %p200
        %p636 = pneg %p197
        %p637 = scmp.lt.s32.totalorder %s36, 1
        %s638 = scalar_select %p637, %s36, 1
        %s639 = smul.addr %s638, 4
        %s640 = smul.addr %s639, 8
        %s641 = scalar_lea.vmem %s7, %s640
        %p642 = pneg %p226
        %p643 = pneg %p223
        %p644 = scmp.lt.s32.totalorder %s36, 1
        %s645 = scalar_select %p644, %s36, 1
        %s646 = scalar_lea.vmem %s8, %s645
        %p647 = pneg %p252
        %p648 = pneg %p249
        %p649 = scmp.lt.s32.totalorder %s36, 1
        %s650 = scalar_select %p649, %s36, 1
        %s651 = scalar_lea.vmem %s9, %s650
        %p652 = pneg %p278
        %p653 = pneg %p275
        %p654 = scmp.lt.s32.totalorder %s36, 1
        %s655 = scalar_select %p654, %s36, 1
        %s656 = scalar_lea.vmem %s10, %s655
        %p657 = pneg %p304
        %p658 = pneg %p301
        %p659 = scmp.lt.s32.totalorder %s36, 1
        %s660 = scalar_select %p659, %s36, 1
        %s661 = smul.addr %s660, 4
        %s662 = smul.addr %s661, 8
        %s663 = scalar_lea.vmem %s11, %s662
        %p664 = pneg %p330
        %p665 = pneg %p327
        %p666 = scmp.lt.s32.totalorder %s36, 1
        %s667 = scalar_select %p666, %s36, 1
        %s668 = scalar_lea.vmem %s12, %s667
        %p669 = pneg %p356
        %p670 = pneg %p353
        %p671 = scmp.lt.s32.totalorder %s36, 1
        %s672 = scalar_select %p671, %s36, 1
        %s673 = smul.addr %s672, 8
        %s674 = smul.addr %s673, 8
        %s675 = scalar_lea.vmem %s13, %s674
        %p676 = pneg %p382
        %p677 = pneg %p379
        %p678 = scmp.lt.s32.totalorder %s36, 1
        %s679 = scalar_select %p678, %s36, 1
        %s680 = scalar_lea.vmem %s14, %s679
        %p681 = pneg %p408
        %p682 = pneg %p405
        %p683 = scmp.lt.s32.totalorder %s36, 1
        %s684 = scalar_select %p683, %s36, 1
        %s685 = scalar_lea.vmem %s15, %s684
        %p686 = pneg %p434
        %p687 = pneg %p431
        %p688 = scmp.lt.s32.totalorder %s36, 1
        %s689 = scalar_select %p688, %s36, 1
        %s690 = scalar_lea.vmem %s16, %s689
        %p691 = pneg %p460
        %p692 = pneg %p457
        %p693 = pneg %p486
        %p694 = pneg %p483
        %s695 = sand.u32 %s473, 1
        %s696 = scalar_lea.sflag [#allocation4], %s695
        %s697 = sand.u32 %s473, 1
        %s698 = smul.addr %s697, 8
        %s699 = scalar_lea.vmem [#allocation3], %s698
        %p700 = scmp.lt.s32.totalorder %s35, 1
        %s701 = scalar_select %p700, %s35, 1
        %s702 = smul.addr %s701, 8
        %s703 = scalar_lea.vmem %s0, %s702
        %p704 = scmp.lt.s32.totalorder %s36, 1
        %s705 = scalar_select %p704, %s36, 1
        %s706 = smul.addr %s705, 4
        %s707 = smul.addr %s706, 8
        %s708 = scalar_lea.vmem %s5, %s707
        %p709 = scmp.lt.s32.totalorder %s36, 1
        %s710 = scalar_select %p709, %s36, 1
        %s711 = scalar_lea.vmem %s6, %s710
        %p712 = scmp.lt.s32.totalorder %s36, 1
        %s713 = scalar_select %p712, %s36, 1
        %s714 = smul.addr %s713, 4
        %s715 = smul.addr %s714, 8
        %s716 = scalar_lea.vmem %s7, %s715
        %p717 = scmp.lt.s32.totalorder %s36, 1
        %s718 = scalar_select %p717, %s36, 1
        %s719 = scalar_lea.vmem %s8, %s718
        %p720 = scmp.lt.s32.totalorder %s36, 1
        %s721 = scalar_select %p720, %s36, 1
        %s722 = scalar_lea.vmem %s9, %s721
        %p723 = scmp.lt.s32.totalorder %s36, 1
        %s724 = scalar_select %p723, %s36, 1
        %s725 = scalar_lea.vmem %s10, %s724
        %p726 = scmp.lt.s32.totalorder %s36, 1
        %s727 = scalar_select %p726, %s36, 1
        %s728 = smul.addr %s727, 4
        %s729 = smul.addr %s728, 8
        %s730 = scalar_lea.vmem %s11, %s729
        %p731 = scmp.lt.s32.totalorder %s36, 1
        %s732 = scalar_select %p731, %s36, 1
        %s733 = scalar_lea.vmem %s12, %s732
        %p734 = scmp.lt.s32.totalorder %s36, 1
        %s735 = scalar_select %p734, %s36, 1
        %s736 = smul.addr %s735, 8
        %s737 = smul.addr %s736, 8
        %s738 = scalar_lea.vmem %s13, %s737
        %p739 = scmp.lt.s32.totalorder %s36, 1
        %s740 = scalar_select %p739, %s36, 1
        %s741 = scalar_lea.vmem %s14, %s740
        %p742 = scmp.lt.s32.totalorder %s36, 1
        %s743 = scalar_select %p742, %s36, 1
        %s744 = scalar_lea.vmem %s15, %s743
        %p745 = scmp.lt.s32.totalorder %s36, 1
        %s746 = scalar_select %p745, %s36, 1
        %s747 = scalar_lea.vmem %s16, %s746
        %p748 = scmp.eq.s32.totalorder %s36, 0
        // Predicated region
        $region89: #{get_bert_forward.1} parent=87 // pred_check
          %p749 = pneg %p748
        $region90: #{get_bert_forward.1} parent=87 // pred_check_branch
          %751 = sbr.rel (%p749) target = $region92
        $region91: #{get_bert_forward.1} parent=87 // pred_region
          %v752 = vld [vmem:[%s703] sm:$0xff]
          %v753 = vlaneseq
          %v754 = vand.u32 %v753, 127
          %755 = vset.pattern.permute.xlu0 0
          %756 = vperm.xlu0 %755, %v752
          %v757 = vpop.permute.xlu0 %756
          %vm758 = vcmp.eq.s32.totalorder %v757, %v754
          %v759 = vsel %vm758, 1, 0
          %v760 = vcvt.s32.f32 %v759
          %v761 = vld [vmem:[%s2] sm:$0xff]
          %v762 = vld [vmem:[%s2 + $0x8] sm:$0xff]
          %v763 = vld [vmem:[%s2 + $0x10] sm:$0xff]
          %v764 = vld [vmem:[%s2 + $0x18] sm:$0xff]
          %v765 = vld [vmem:[%s2 + $0x20] sm:$0xff]
          %v766 = vld [vmem:[%s2 + $0x28] sm:$0xff]
          %v767 = vld [vmem:[%s2 + $0x30] sm:$0xff]
          %v768 = vld [vmem:[%s2 + $0x38] sm:$0xff]
          %v769 = vld [vmem:[%s1] sm:$0xff]
          %vm770 = vcmask 523264
          %v772 = vsel %vm770, %v760, 0
          %774 = vmatprep.subr.mxu0 0.0
          %775 = vmatpush1.msra.mxu0 %v761
          %776 = vmatprep.subr.mxu0 0.0
          %777 = vmatpush1.msra.mxu0 %v762
          %778 = vmatprep.subr.mxu0 0.0
          %779 = vmatpush1.msra.mxu0 %v763
          %780 = vmatprep.subr.mxu0 0.0
          %781 = vmatpush1.msra.mxu0 %v764
          %782 = vmatprep.subr.mxu0 0.0
          %783 = vmatpush1.msra.mxu0 %v765
          %784 = vmatprep.subr.mxu0 0.0
          %785 = vmatpush1.msra.mxu0 %v766
          %786 = vmatprep.subr.mxu0 0.0
          %787 = vmatpush1.msra.mxu0 %v767
          %788 = vmatprep.subr.mxu0 0.0
          %789 = vmatpush1.msra.mxu0 %v768
          %790 = vmatprep.subr.mxu0 0.0
          %791 = vmatpush1.msra.mxu0 0.0
          %792 = vmatprep.subr.mxu0 0.0
          %793 = vmatpush1.msra.mxu0 0.0
          %794 = vmatprep.subr.mxu0 0.0
          %795 = vmatpush1.msra.mxu0 0.0
          %796 = vmatprep.subr.mxu0 0.0
          %797 = vmatpush1.msra.mxu0 0.0
          %798 = vmatprep.subr.mxu0 0.0
          %799 = vmatpush1.msra.mxu0 0.0
          %800 = vmatprep.subr.mxu0 0.0
          %801 = vmatpush1.msra.mxu0 0.0
          %802 = vmatprep.subr.mxu0 0.0
          %803 = vmatpush1.msra.mxu0 0.0
          %804 = vmatprep.subr.mxu0 0.0
          %805 = vmatpush1.msra.mxu0 0.0
          %806 = vmatprep.subr.mxu0 0.0
          %807 = vmatpush1.msra.mxu0 0.0
          %808 = vmatprep.subr.mxu0 0.0
          %809 = vmatpush1.msra.mxu0 0.0
          %810 = vmatprep.subr.mxu0 0.0
          %811 = vmatpush1.msra.mxu0 0.0
          %812 = vmatprep.subr.mxu0 0.0
          %813 = vmatpush1.msra.mxu0 0.0
          %814 = vmatprep.subr.mxu0 0.0
          %815 = vmatpush1.msra.mxu0 0.0
          %816 = vmatprep.subr.mxu0 0.0
          %817 = vmatpush1.msra.mxu0 0.0
          %818 = vmatprep.subr.mxu0 0.0
          %819 = vmatpush1.msra.mxu0 0.0
          %820 = vmatprep.subr.mxu0 0.0
          %821 = vmatpush1.msra.mxu0 0.0
          %822 = vmatprep.subr.mxu0 0.0
          %823 = vmatpush1.msra.mxu0 0.0
          %824 = vmatprep.subr.mxu0 0.0
          %825 = vmatpush1.msra.mxu0 0.0
          %826 = vmatprep.subr.mxu0 0.0
          %827 = vmatpush1.msra.mxu0 0.0
          %828 = vmatprep.subr.mxu0 0.0
          %829 = vmatpush1.msra.mxu0 0.0
          %830 = vmatprep.subr.mxu0 0.0
          %831 = vmatpush1.msra.mxu0 0.0
          %832 = vmatprep.subr.mxu0 0.0
          %833 = vmatpush1.msra.mxu0 0.0
          %834 = vmatprep.subr.mxu0 0.0
          %835 = vmatpush1.msra.mxu0 0.0
          %836 = vmatprep.subr.mxu0 0.0
          %837 = vmatpush1.msra.mxu0 0.0
          %838 = vmatprep.mubr.f32.mxu0 0.0
          %839 = vmatmul.mubr.f32.gmra.mrb[0].mxu0 %v772
          %v840 = vpop.f32.mrb[0].mxu0
          %v841 = vadd.f32 %v769, %v840
          %v842 = vpop.f32.mrb[0].mxu0
          %843 = vdwg.mxu0
          %v844 = vld [vmem:[%s3] sm:$0x1]
          %v845 = vld [vmem:[%s4] sm:$0x1]
          %vm846 = vcmask 261120
          %v847 = vsel %vm846, %v841, 0.0
          %848 = vadd.xlane.f32.xlu0 %v847
          %v849 = vpop.xlane.xlu0 %848
          %v850 = vrcp.pop 32.0
          %v851 = vmul.f32 %v849, %v850
          %v852 = vsub.f32 %v841, %v851
          %v853 = vmul.f32 %v852, %v852
          %v854 = vsel %vm846, %v853, 0.0
          %855 = vadd.xlane.f32.xlu0 %v854
          %v856 = vpop.xlane.xlu0 %855
          %v857 = vmul.f32 %v856, %v850
          %v858 = vadd.f32 %v857, 1e-12
          %v859 = vrsqrt.pop %v858
          %v860 = vmul.f32 %v852, %v859
          %v862 = vlaneseq
          %v863 = vshrl.u32 %v862, 7
          %v864 = vsub.s32 0, %v863
          %v865 = vrot.slane %v844, %v864
          %v867 = vmul.f32 %v860, %v865
          %v869 = vlaneseq
          %v870 = vshrl.u32 %v869, 7
          %v871 = vsub.s32 0, %v870
          %v872 = vrot.slane %v845, %v871
          %v874 = vadd.f32 %v867, %v872
          %875 = vst.msk [vmem:[#allocation2] sm:$0xff] %vm846, %v874
        $region92: #{get_bert_forward.1} parent=87 // pred_fallthru
          _
        %v876 = vld [vmem:[#allocation2] sm:$0xff]
        %v877 = vld [vmem:[%s708] sm:$0xff]
        %v878 = vld [vmem:[%s708 + $0x8] sm:$0xff]
        %v879 = vld [vmem:[%s708 + $0x10] sm:$0xff]
        %v880 = vld [vmem:[%s708 + $0x18] sm:$0xff]
        %v881 = vld [vmem:[%s711] sm:$0x1]
        %v883 = vlaneseq
        %v884 = vshrl.u32 %v883, 7
        %v885 = vsub.s32 0, %v884
        %v886 = vrot.slane %v881, %v885
        %vm888 = vcmask 261120
        %v890 = vsel %vm888, %v876, 0
        %892 = vmatprep.subr.mxu0 0.0
        %893 = vmatpush1.msra.mxu0 %v877
        %894 = vmatprep.subr.mxu0 0.0
        %895 = vmatpush1.msra.mxu0 %v878
        %896 = vmatprep.subr.mxu0 0.0
        %897 = vmatpush1.msra.mxu0 %v879
        %898 = vmatprep.subr.mxu0 0.0
        %899 = vmatpush1.msra.mxu0 %v880
        %900 = vmatprep.subr.mxu0 0.0
        %901 = vmatpush1.msra.mxu0 0.0
        %902 = vmatprep.subr.mxu0 0.0
        %903 = vmatpush1.msra.mxu0 0.0
        %904 = vmatprep.subr.mxu0 0.0
        %905 = vmatpush1.msra.mxu0 0.0
        %906 = vmatprep.subr.mxu0 0.0
        %907 = vmatpush1.msra.mxu0 0.0
        %908 = vmatprep.subr.mxu0 0.0
        %909 = vmatpush1.msra.mxu0 0.0
        %910 = vmatprep.subr.mxu0 0.0
        %911 = vmatpush1.msra.mxu0 0.0
        %912 = vmatprep.subr.mxu0 0.0
        %913 = vmatpush1.msra.mxu0 0.0
        %914 = vmatprep.subr.mxu0 0.0
        %915 = vmatpush1.msra.mxu0 0.0
        %916 = vmatprep.subr.mxu0 0.0
        %917 = vmatpush1.msra.mxu0 0.0
        %918 = vmatprep.subr.mxu0 0.0
        %919 = vmatpush1.msra.mxu0 0.0
        %920 = vmatprep.subr.mxu0 0.0
        %921 = vmatpush1.msra.mxu0 0.0
        %922 = vmatprep.subr.mxu0 0.0
        %923 = vmatpush1.msra.mxu0 0.0
        %924 = vmatprep.subr.mxu0 0.0
        %925 = vmatpush1.msra.mxu0 0.0
        %926 = vmatprep.subr.mxu0 0.0
        %927 = vmatpush1.msra.mxu0 0.0
        %928 = vmatprep.subr.mxu0 0.0
        %929 = vmatpush1.msra.mxu0 0.0
        %930 = vmatprep.subr.mxu0 0.0
        %931 = vmatpush1.msra.mxu0 0.0
        %932 = vmatprep.subr.mxu0 0.0
        %933 = vmatpush1.msra.mxu0 0.0
        %934 = vmatprep.subr.mxu0 0.0
        %935 = vmatpush1.msra.mxu0 0.0
        %936 = vmatprep.subr.mxu0 0.0
        %937 = vmatpush1.msra.mxu0 0.0
        %938 = vmatprep.subr.mxu0 0.0
        %939 = vmatpush1.msra.mxu0 0.0
        %940 = vmatprep.subr.mxu0 0.0
        %941 = vmatpush1.msra.mxu0 0.0
        %942 = vmatprep.subr.mxu0 0.0
        %943 = vmatpush1.msra.mxu0 0.0
        %944 = vmatprep.subr.mxu0 0.0
        %945 = vmatpush1.msra.mxu0 0.0
        %946 = vmatprep.subr.mxu0 0.0
        %947 = vmatpush1.msra.mxu0 0.0
        %948 = vmatprep.subr.mxu0 0.0
        %949 = vmatpush1.msra.mxu0 0.0
        %950 = vmatprep.subr.mxu0 0.0
        %951 = vmatpush1.msra.mxu0 0.0
        %952 = vmatprep.subr.mxu0 0.0
        %953 = vmatpush1.msra.mxu0 0.0
        %954 = vmatprep.subr.mxu0 0.0
        %955 = vmatpush1.msra.mxu0 0.0
        %956 = vmatprep.mubr.f32.mxu0 0.0
        %957 = vmatmul.mubr.f32.gmra.mrb[0].mxu0 %v890
        %v958 = vpop.f32.mrb[0].mxu0
        %v959 = vadd.f32 %v886, %v958
        %v960 = vpop.f32.mrb[0].mxu0
        %961 = vdwg.mxu0
        %963 = vrot.lane.b32.xlu0 %v959, 96
        %v964 = vpop.permute.xlu0 %963
        %vm965 = vcmask 130048
        %v966 = vsel %vm965, %v959, 0
        %v968 = vsel %vm965, %v964, 0
        %970 = vmatprep.subr.mxu0 0.0
        %971 = vmatpush1.xpose.msra.mxu0 %v968
        %972 = vmatprep.subr.mxu0 0.0
        %973 = vmatpush1.xpose.msra.mxu0 0.0
        %974 = vmatprep.subr.mxu0 0.0
        %975 = vmatpush1.xpose.msra.mxu0 0.0
        %976 = vmatprep.subr.mxu0 0.0
        %977 = vmatpush1.xpose.msra.mxu0 0.0
        %978 = vmatprep.subr.mxu0 0.0
        %979 = vmatpush1.xpose.msra.mxu0 0.0
        %980 = vmatprep.subr.mxu0 0.0
        %981 = vmatpush1.xpose.msra.mxu0 0.0
        %982 = vmatprep.subr.mxu0 0.0
        %983 = vmatpush1.xpose.msra.mxu0 0.0
        %984 = vmatprep.subr.mxu0 0.0
        %985 = vmatpush1.xpose.msra.mxu0 0.0
        %986 = vmatprep.subr.mxu0 0.0
        %987 = vmatpush1.xpose.msra.mxu0 0.0
        %988 = vmatprep.subr.mxu0 0.0
        %989 = vmatpush1.xpose.msra.mxu0 0.0
        %990 = vmatprep.subr.mxu0 0.0
        %991 = vmatpush1.xpose.msra.mxu0 0.0
        %992 = vmatprep.subr.mxu0 0.0
        %993 = vmatpush1.xpose.msra.mxu0 0.0
        %994 = vmatprep.subr.mxu0 0.0
        %995 = vmatpush1.xpose.msra.mxu0 0.0
        %996 = vmatprep.subr.mxu0 0.0
        %997 = vmatpush1.xpose.msra.mxu0 0.0
        %998 = vmatprep.subr.mxu0 0.0
        %999 = vmatpush1.xpose.msra.mxu0 0.0
        %1000 = vmatprep.subr.mxu0 0.0
        %1001 = vmatpush1.xpose.msra.mxu0 0.0
        %1002 = vmatprep.subr.mxu0 0.0
        %1003 = vmatpush1.xpose.msra.mxu0 0.0
        %1004 = vmatprep.subr.mxu0 0.0
        %1005 = vmatpush1.xpose.msra.mxu0 0.0
        %1006 = vmatprep.subr.mxu0 0.0
        %1007 = vmatpush1.xpose.msra.mxu0 0.0
        %1008 = vmatprep.subr.mxu0 0.0
        %1009 = vmatpush1.xpose.msra.mxu0 0.0
        %1010 = vmatprep.subr.mxu0 0.0
        %1011 = vmatpush1.xpose.msra.mxu0 0.0
        %1012 = vmatprep.subr.mxu0 0.0
        %1013 = vmatpush1.xpose.msra.mxu0 0.0
        %1014 = vmatprep.subr.mxu0 0.0
        %1015 = vmatpush1.xpose.msra.mxu0 0.0
        %1016 = vmatprep.subr.mxu0 0.0
        %1017 = vmatpush1.xpose.msra.mxu0 0.0
        %1018 = vmatprep.subr.mxu0 0.0
        %1019 = vmatpush1.xpose.msra.mxu0 0.0
        %1020 = vmatprep.subr.mxu0 0.0
        %1021 = vmatpush1.xpose.msra.mxu0 0.0
        %1022 = vmatprep.subr.mxu0 0.0
        %1023 = vmatpush1.xpose.msra.mxu0 0.0
        %1024 = vmatprep.subr.mxu0 0.0
        %1025 = vmatpush1.xpose.msra.mxu0 0.0
        %1026 = vmatprep.subr.mxu0 0.0
        %1027 = vmatpush1.xpose.msra.mxu0 0.0
        %1028 = vmatprep.subr.mxu0 0.0
        %1029 = vmatpush1.xpose.msra.mxu0 0.0
        %1030 = vmatprep.subr.mxu0 0.0
        %1031 = vmatpush1.xpose.msra.mxu0 0.0
        %1032 = vmatprep.subr.mxu0 0.0
        %1033 = vmatpush1.xpose.msra.mxu0 0.0
        %1034 = vmatprep.mubr.f32.mxu0 0.0
        %1035 = vmatmul.mubr.f32.gmra.mrb[0].mxu0 %v966
        %v1036 = vpop.f32.mrb[0].mxu0
        %v1037 = vadd.f32 0.0, %v1036
        %v1038 = vpop.f32.mrb[0].mxu0
        %1039 = vdwg.mxu0
        %vm1040 = vcmask 64512
        %v1041 = vsel %vm1040, %v1037, -inf
        %1042 = vmax.xlane.f32.xlu0 %v1041
        %v1043 = vpop.xlane.xlu0 %1042
        %v1044 = vsub.f32 %v1037, %v1043
        %v1045 = vmul.f32 %v1044, 1.442695
        %v1046 = vpow.pop %v1045
        %v1047 = vsel %vm1040, %v1046, 0.0
        %1048 = vadd.xlane.f32.xlu0 %v1047
        %v1049 = vpop.xlane.xlu0 %1048
        %v1050 = vrcp.pop %v1049
        %v1051 = vmul.f32 %v1046, %v1050
        %1052 = vrot.lane.b32.xlu0 %v959, 64
        %v1053 = vpop.permute.xlu0 %1052
        %v1056 = vsel %vm1040, %v1051, 0
        %1058 = vmatprep.subr.mxu0 0.0
        %1059 = vmatpush1.msra.mxu0 %v1053
        %1060 = vmatprep.subr.mxu0 0.0
        %1061 = vmatpush1.msra.mxu0 0.0
        %1062 = vmatprep.subr.mxu0 0.0
        %1063 = vmatpush1.msra.mxu0 0.0
        %1064 = vmatprep.subr.mxu0 0.0
        %1065 = vmatpush1.msra.mxu0 0.0
        %1066 = vmatprep.subr.mxu0 0.0
        %1067 = vmatpush1.msra.mxu0 0.0
        %1068 = vmatprep.subr.mxu0 0.0
        %1069 = vmatpush1.msra.mxu0 0.0
        %1070 = vmatprep.subr.mxu0 0.0
        %1071 = vmatpush1.msra.mxu0 0.0
        %1072 = vmatprep.subr.mxu0 0.0
        %1073 = vmatpush1.msra.mxu0 0.0
        %1074 = vmatprep.subr.mxu0 0.0
        %1075 = vmatpush1.msra.mxu0 0.0
        %1076 = vmatprep.subr.mxu0 0.0
        %1077 = vmatpush1.msra.mxu0 0.0
        %1078 = vmatprep.subr.mxu0 0.0
        %1079 = vmatpush1.msra.mxu0 0.0
        %1080 = vmatprep.subr.mxu0 0.0
        %1081 = vmatpush1.msra.mxu0 0.0
        %1082 = vmatprep.subr.mxu0 0.0
        %1083 = vmatpush1.msra.mxu0 0.0
        %1084 = vmatprep.subr.mxu0 0.0
        %1085 = vmatpush1.msra.mxu0 0.0
        %1086 = vmatprep.subr.mxu0 0.0
        %1087 = vmatpush1.msra.mxu0 0.0
        %1088 = vmatprep.subr.mxu0 0.0
        %1089 = vmatpush1.msra.mxu0 0.0
        %1090 = vmatprep.subr.mxu0 0.0
        %1091 = vmatpush1.msra.mxu0 0.0
        %1092 = vmatprep.subr.mxu0 0.0
        %1093 = vmatpush1.msra.mxu0 0.0
        %1094 = vmatprep.subr.mxu0 0.0
        %1095 = vmatpush1.msra.mxu0 0.0
        %1096 = vmatprep.subr.mxu0 0.0
        %1097 = vmatpush1.msra.mxu0 0.0
        %1098 = vmatprep.subr.mxu0 0.0
        %1099 = vmatpush1.msra.mxu0 0.0
        %1100 = vmatprep.subr.mxu0 0.0
        %1101 = vmatpush1.msra.mxu0 0.0
        %1102 = vmatprep.subr.mxu0 0.0
        %1103 = vmatpush1.msra.mxu0 0.0
        %1104 = vmatprep.subr.mxu0 0.0
        %1105 = vmatpush1.msra.mxu0 0.0
        %1106 = vmatprep.subr.mxu0 0.0
        %1107 = vmatpush1.msra.mxu0 0.0
        %1108 = vmatprep.subr.mxu0 0.0
        %1109 = vmatpush1.msra.mxu0 0.0
        %1110 = vmatprep.subr.mxu0 0.0
        %1111 = vmatpush1.msra.mxu0 0.0
        %1112 = vmatprep.subr.mxu0 0.0
        %1113 = vmatpush1.msra.mxu0 0.0
        %1114 = vmatprep.subr.mxu0 0.0
        %1115 = vmatpush1.msra.mxu0 0.0
        %1116 = vmatprep.subr.mxu0 0.0
        %1117 = vmatpush1.msra.mxu0 0.0
        %1118 = vmatprep.subr.mxu0 0.0
        %1119 = vmatpush1.msra.mxu0 0.0
        %1120 = vmatprep.subr.mxu0 0.0
        %1121 = vmatpush1.msra.mxu0 0.0
        %1122 = vmatprep.mubr.f32.mxu0 0.0
        %1123 = vmatmul.mubr.f32.gmra.mrb[0].mxu0 %v1056
        %v1124 = vpop.f32.mrb[0].mxu0
        %v1125 = vadd.f32 0.0, %v1124
        %v1126 = vpop.f32.mrb[0].mxu0
        %1127 = vdwg.mxu0
        %1128 = vrot.lane.b32.xlu0 %v959, 112
        %v1129 = vpop.permute.xlu0 %1128
        %1130 = vrot.lane.b32.xlu0 %v959, 80
        %v1131 = vpop.permute.xlu0 %1130
        %v1132 = vsel %vm965, %v1129, 0
        %v1134 = vsel %vm965, %v1131, 0
        %1136 = vmatprep.subr.mxu0 0.0
        %1137 = vmatpush1.xpose.msra.mxu0 %v1134
        %1138 = vmatprep.subr.mxu0 0.0
        %1139 = vmatpush1.xpose.msra.mxu0 0.0
        %1140 = vmatprep.subr.mxu0 0.0
        %1141 = vmatpush1.xpose.msra.mxu0 0.0
        %1142 = vmatprep.subr.mxu0 0.0
        %1143 = vmatpush1.xpose.msra.mxu0 0.0
        %1144 = vmatprep.subr.mxu0 0.0
        %1145 = vmatpush1.xpose.msra.mxu0 0.0
        %1146 = vmatprep.subr.mxu0 0.0
        %1147 = vmatpush1.xpose.msra.mxu0 0.0
        %1148 = vmatprep.subr.mxu0 0.0
        %1149 = vmatpush1.xpose.msra.mxu0 0.0
        %1150 = vmatprep.subr.mxu0 0.0
        %1151 = vmatpush1.xpose.msra.mxu0 0.0
        %1152 = vmatprep.subr.mxu0 0.0
        %1153 = vmatpush1.xpose.msra.mxu0 0.0
        %1154 = vmatprep.subr.mxu0 0.0
        %1155 = vmatpush1.xpose.msra.mxu0 0.0
        %1156 = vmatprep.subr.mxu0 0.0
        %1157 = vmatpush1.xpose.msra.mxu0 0.0
        %1158 = vmatprep.subr.mxu0 0.0
        %1159 = vmatpush1.xpose.msra.mxu0 0.0
        %1160 = vmatprep.subr.mxu0 0.0
        %1161 = vmatpush1.xpose.msra.mxu0 0.0
        %1162 = vmatprep.subr.mxu0 0.0
        %1163 = vmatpush1.xpose.msra.mxu0 0.0
        %1164 = vmatprep.subr.mxu0 0.0
        %1165 = vmatpush1.xpose.msra.mxu0 0.0
        %1166 = vmatprep.subr.mxu0 0.0
        %1167 = vmatpush1.xpose.msra.mxu0 0.0
        %1168 = vmatprep.subr.mxu0 0.0
        %1169 = vmatpush1.xpose.msra.mxu0 0.0
        %1170 = vmatprep.subr.mxu0 0.0
        %1171 = vmatpush1.xpose.msra.mxu0 0.0
        %1172 = vmatprep.subr.mxu0 0.0
        %1173 = vmatpush1.xpose.msra.mxu0 0.0
        %1174 = vmatprep.subr.mxu0 0.0
        %1175 = vmatpush1.xpose.msra.mxu0 0.0
        %1176 = vmatprep.subr.mxu0 0.0
        %1177 = vmatpush1.xpose.msra.mxu0 0.0
        %1178 = vmatprep.subr.mxu0 0.0
        %1179 = vmatpush1.xpose.msra.mxu0 0.0
        %1180 = vmatprep.subr.mxu0 0.0
        %1181 = vmatpush1.xpose.msra.mxu0 0.0
        %1182 = vmatprep.subr.mxu0 0.0
        %1183 = vmatpush1.xpose.msra.mxu0 0.0
        %1184 = vmatprep.subr.mxu0 0.0
        %1185 = vmatpush1.xpose.msra.mxu0 0.0
        %1186 = vmatprep.subr.mxu0 0.0
        %1187 = vmatpush1.xpose.msra.mxu0 0.0
        %1188 = vmatprep.subr.mxu0 0.0
        %1189 = vmatpush1.xpose.msra.mxu0 0.0
        %1190 = vmatprep.subr.mxu0 0.0
        %1191 = vmatpush1.xpose.msra.mxu0 0.0
        %1192 = vmatprep.subr.mxu0 0.0
        %1193 = vmatpush1.xpose.msra.mxu0 0.0
        %1194 = vmatprep.subr.mxu0 0.0
        %1195 = vmatpush1.xpose.msra.mxu0 0.0
        %1196 = vmatprep.subr.mxu0 0.0
        %1197 = vmatpush1.xpose.msra.mxu0 0.0
        %1198 = vmatprep.subr.mxu0 0.0
        %1199 = vmatpush1.xpose.msra.mxu0 0.0
        %1200 = vmatprep.mubr.f32.mxu0 0.0
        %1201 = vmatmul.mubr.f32.gmra.mrb[0].mxu0 %v1132
        %v1202 = vpop.f32.mrb[0].mxu0
        %v1203 = vadd.f32 0.0, %v1202
        %v1204 = vpop.f32.mrb[0].mxu0
        %1205 = vdwg.mxu0
        %v1206 = vsel %vm1040, %v1203, -inf
        %1207 = vmax.xlane.f32.xlu0 %v1206
        %v1208 = vpop.xlane.xlu0 %1207
        %v1209 = vsub.f32 %v1203, %v1208
        %v1210 = vmul.f32 %v1209, 1.442695
        %v1211 = vpow.pop %v1210
        %v1212 = vsel %vm1040, %v1211, 0.0
        %1213 = vadd.xlane.f32.xlu0 %v1212
        %v1214 = vpop.xlane.xlu0 %1213
        %v1215 = vrcp.pop %v1214
        %v1216 = vmul.f32 %v1211, %v1215
        %1217 = vrot.lane.b32.xlu0 %v959, 48
        %v1218 = vpop.permute.xlu0 %1217
        %v1221 = vsel %vm1040, %v1216, 0
        %1223 = vmatprep.subr.mxu0 0.0
        %1224 = vmatpush1.msra.mxu0 %v1218
        %1225 = vmatprep.subr.mxu0 0.0
        %1226 = vmatpush1.msra.mxu0 0.0
        %1227 = vmatprep.subr.mxu0 0.0
        %1228 = vmatpush1.msra.mxu0 0.0
        %1229 = vmatprep.subr.mxu0 0.0
        %1230 = vmatpush1.msra.mxu0 0.0
        %1231 = vmatprep.subr.mxu0 0.0
        %1232 = vmatpush1.msra.mxu0 0.0
        %1233 = vmatprep.subr.mxu0 0.0
        %1234 = vmatpush1.msra.mxu0 0.0
        %1235 = vmatprep.subr.mxu0 0.0
        %1236 = vmatpush1.msra.mxu0 0.0
        %1237 = vmatprep.subr.mxu0 0.0
        %1238 = vmatpush1.msra.mxu0 0.0
        %1239 = vmatprep.subr.mxu0 0.0
        %1240 = vmatpush1.msra.mxu0 0.0
        %1241 = vmatprep.subr.mxu0 0.0
        %1242 = vmatpush1.msra.mxu0 0.0
        %1243 = vmatprep.subr.mxu0 0.0
        %1244 = vmatpush1.msra.mxu0 0.0
        %1245 = vmatprep.subr.mxu0 0.0
        %1246 = vmatpush1.msra.mxu0 0.0
        %1247 = vmatprep.subr.mxu0 0.0
        %1248 = vmatpush1.msra.mxu0 0.0
        %1249 = vmatprep.subr.mxu0 0.0
        %1250 = vmatpush1.msra.mxu0 0.0
        %1251 = vmatprep.subr.mxu0 0.0
        %1252 = vmatpush1.msra.mxu0 0.0
        %1253 = vmatprep.subr.mxu0 0.0
        %1254 = vmatpush1.msra.mxu0 0.0
        %1255 = vmatprep.subr.mxu0 0.0
        %1256 = vmatpush1.msra.mxu0 0.0
        %1257 = vmatprep.subr.mxu0 0.0
        %1258 = vmatpush1.msra.mxu0 0.0
        %1259 = vmatprep.subr.mxu0 0.0
        %1260 = vmatpush1.msra.mxu0 0.0
        %1261 = vmatprep.subr.mxu0 0.0
        %1262 = vmatpush1.msra.mxu0 0.0
        %1263 = vmatprep.subr.mxu0 0.0
        %1264 = vmatpush1.msra.mxu0 0.0
        %1265 = vmatprep.subr.mxu0 0.0
        %1266 = vmatpush1.msra.mxu0 0.0
        %1267 = vmatprep.subr.mxu0 0.0
        %1268 = vmatpush1.msra.mxu0 0.0
        %1269 = vmatprep.subr.mxu0 0.0
        %1270 = vmatpush1.msra.mxu0 0.0
        %1271 = vmatprep.subr.mxu0 0.0
        %1272 = vmatpush1.msra.mxu0 0.0
        %1273 = vmatprep.subr.mxu0 0.0
        %1274 = vmatpush1.msra.mxu0 0.0
        %1275 = vmatprep.subr.mxu0 0.0
        %1276 = vmatpush1.msra.mxu0 0.0
        %1277 = vmatprep.subr.mxu0 0.0
        %1278 = vmatpush1.msra.mxu0 0.0
        %1279 = vmatprep.subr.mxu0 0.0
        %1280 = vmatpush1.msra.mxu0 0.0
        %1281 = vmatprep.subr.mxu0 0.0
        %1282 = vmatpush1.msra.mxu0 0.0
        %1283 = vmatprep.subr.mxu0 0.0
        %1284 = vmatpush1.msra.mxu0 0.0
        %1285 = vmatprep.subr.mxu0 0.0
        %1286 = vmatpush1.msra.mxu0 0.0
        %1287 = vmatprep.mubr.f32.mxu0 0.0
        %1288 = vmatmul.mubr.f32.gmra.mrb[0].mxu0 %v1221
        %v1289 = vpop.f32.mrb[0].mxu0
        %v1290 = vadd.f32 0.0, %v1289
        %v1291 = vpop.f32.mrb[0].mxu0
        %1292 = vdwg.mxu0
        %1294 = vrot.lane.b32.xlu0 %v1290, 16
        %v1295 = vpop.permute.xlu0 %1294
        %v1297 = vsel %vm965, %v1125, %v1295
        %v1298 = vld [vmem:[%s716] sm:$0xff]
        %v1299 = vld [vmem:[%s716 + $0x8] sm:$0xff]
        %v1300 = vld [vmem:[%s716 + $0x10] sm:$0xff]
        %v1301 = vld [vmem:[%s716 + $0x18] sm:$0xff]
        %v1302 = vld [vmem:[%s719] sm:$0x1]
        %v1304 = vlaneseq
        %v1305 = vshrl.u32 %v1304, 7
        %v1306 = vsub.s32 0, %v1305
        %v1307 = vrot.slane %v1302, %v1306
        %v1310 = vsel %vm888, %v1297, 0
        %1312 = vmatprep.subr.mxu0 0.0
        %1313 = vmatpush1.msra.mxu0 %v1298
        %1314 = vmatprep.subr.mxu0 0.0
        %1315 = vmatpush1.msra.mxu0 %v1299
        %1316 = vmatprep.subr.mxu0 0.0
        %1317 = vmatpush1.msra.mxu0 %v1300
        %1318 = vmatprep.subr.mxu0 0.0
        %1319 = vmatpush1.msra.mxu0 %v1301
        %1320 = vmatprep.subr.mxu0 0.0
        %1321 = vmatpush1.msra.mxu0 0.0
        %1322 = vmatprep.subr.mxu0 0.0
        %1323 = vmatpush1.msra.mxu0 0.0
        %1324 = vmatprep.subr.mxu0 0.0
        %1325 = vmatpush1.msra.mxu0 0.0
        %1326 = vmatprep.subr.mxu0 0.0
        %1327 = vmatpush1.msra.mxu0 0.0
        %1328 = vmatprep.subr.mxu0 0.0
        %1329 = vmatpush1.msra.mxu0 0.0
        %1330 = vmatprep.subr.mxu0 0.0
        %1331 = vmatpush1.msra.mxu0 0.0
        %1332 = vmatprep.subr.mxu0 0.0
        %1333 = vmatpush1.msra.mxu0 0.0
        %1334 = vmatprep.subr.mxu0 0.0
        %1335 = vmatpush1.msra.mxu0 0.0
        %1336 = vmatprep.subr.mxu0 0.0
        %1337 = vmatpush1.msra.mxu0 0.0
        %1338 = vmatprep.subr.mxu0 0.0
        %1339 = vmatpush1.msra.mxu0 0.0
        %1340 = vmatprep.subr.mxu0 0.0
        %1341 = vmatpush1.msra.mxu0 0.0
        %1342 = vmatprep.subr.mxu0 0.0
        %1343 = vmatpush1.msra.mxu0 0.0
        %1344 = vmatprep.subr.mxu0 0.0
        %1345 = vmatpush1.msra.mxu0 0.0
        %1346 = vmatprep.subr.mxu0 0.0
        %1347 = vmatpush1.msra.mxu0 0.0
        %1348 = vmatprep.subr.mxu0 0.0
        %1349 = vmatpush1.msra.mxu0 0.0
        %1350 = vmatprep.subr.mxu0 0.0
        %1351 = vmatpush1.msra.mxu0 0.0
        %1352 = vmatprep.subr.mxu0 0.0
        %1353 = vmatpush1.msra.mxu0 0.0
        %1354 = vmatprep.subr.mxu0 0.0
        %1355 = vmatpush1.msra.mxu0 0.0
        %1356 = vmatprep.subr.mxu0 0.0
        %1357 = vmatpush1.msra.mxu0 0.0
        %1358 = vmatprep.subr.mxu0 0.0
        %1359 = vmatpush1.msra.mxu0 0.0
        %1360 = vmatprep.subr.mxu0 0.0
        %1361 = vmatpush1.msra.mxu0 0.0
        %1362 = vmatprep.subr.mxu0 0.0
        %1363 = vmatpush1.msra.mxu0 0.0
        %1364 = vmatprep.subr.mxu0 0.0
        %1365 = vmatpush1.msra.mxu0 0.0
        %1366 = vmatprep.subr.mxu0 0.0
        %1367 = vmatpush1.msra.mxu0 0.0
        %1368 = vmatprep.subr.mxu0 0.0
        %1369 = vmatpush1.msra.mxu0 0.0
        %1370 = vmatprep.subr.mxu0 0.0
        %1371 = vmatpush1.msra.mxu0 0.0
        %1372 = vmatprep.subr.mxu0 0.0
        %1373 = vmatpush1.msra.mxu0 0.0
        %1374 = vmatprep.subr.mxu0 0.0
        %1375 = vmatpush1.msra.mxu0 0.0
        %1376 = vmatprep.mubr.f32.mxu0 0.0
        %1377 = vmatmul.mubr.f32.gmra.mrb[0].mxu0 %v1310
        %v1378 = vpop.f32.mrb[0].mxu0
        %v1379 = vadd.f32 %v1307, %v1378
        %v1380 = vpop.f32.mrb[0].mxu0
        %1381 = vdwg.mxu0
        %v1382 = vadd.f32 %v876, %v1379
        %v1383 = vld [vmem:[%s722] sm:$0x1]
        %v1384 = vld [vmem:[%s725] sm:$0x1]
        %v1385 = vsel %vm888, %v1382, 0.0
        %1386 = vadd.xlane.f32.xlu0 %v1385
        %v1387 = vpop.xlane.xlu0 %1386
        %v1388 = vrcp.pop 32.0
        %v1389 = vmul.f32 %v1387, %v1388
        %v1390 = vsub.f32 %v1382, %v1389
        %v1391 = vmul.f32 %v1390, %v1390
        %v1392 = vsel %vm888, %v1391, 0.0
        %1393 = vadd.xlane.f32.xlu0 %v1392
        %v1394 = vpop.xlane.xlu0 %1393
        %v1395 = vmul.f32 %v1394, %v1388
        %v1396 = vadd.f32 %v1395, 1e-12
        %v1397 = vrsqrt.pop %v1396
        %v1398 = vmul.f32 %v1390, %v1397
        %v1400 = vlaneseq
        %v1401 = vshrl.u32 %v1400, 7
        %v1402 = vsub.s32 0, %v1401
        %v1403 = vrot.slane %v1383, %v1402
        %v1405 = vmul.f32 %v1398, %v1403
        %v1407 = vlaneseq
        %v1408 = vshrl.u32 %v1407, 7
        %v1409 = vsub.s32 0, %v1408
        %v1410 = vrot.slane %v1384, %v1409
        %v1412 = vadd.f32 %v1405, %v1410
        %v1413 = vld [vmem:[%s730] sm:$0xff]
        %v1414 = vld [vmem:[%s730 + $0x8] sm:$0xff]
        %v1415 = vld [vmem:[%s730 + $0x10] sm:$0xff]
        %v1416 = vld [vmem:[%s730 + $0x18] sm:$0xff]
        %v1417 = vld [vmem:[%s733] sm:$0x1]
        %v1419 = vlaneseq
        %v1420 = vshrl.u32 %v1419, 7
        %v1421 = vsub.s32 0, %v1420
        %v1422 = vrot.slane %v1417, %v1421
        %v1425 = vsel %vm888, %v1412, 0
        %1427 = vmatprep.subr.mxu0 0.0
        %1428 = vmatpush1.msra.mxu0 %v1413
        %1429 = vmatprep.subr.mxu0 0.0
        %1430 = vmatpush1.msra.mxu0 %v1414
        %1431 = vmatprep.subr.mxu0 0.0
        %1432 = vmatpush1.msra.mxu0 %v1415
        %1433 = vmatprep.subr.mxu0 0.0
        %1434 = vmatpush1.msra.mxu0 %v1416
        %1435 = vmatprep.subr.mxu0 0.0
        %1436 = vmatpush1.msra.mxu0 0.0
        %1437 = vmatprep.subr.mxu0 0.0
        %1438 = vmatpush1.msra.mxu0 0.0
        %1439 = vmatprep.subr.mxu0 0.0
        %1440 = vmatpush1.msra.mxu0 0.0
        %1441 = vmatprep.subr.mxu0 0.0
        %1442 = vmatpush1.msra.mxu0 0.0
        %1443 = vmatprep.subr.mxu0 0.0
        %1444 = vmatpush1.msra.mxu0 0.0
        %1445 = vmatprep.subr.mxu0 0.0
        %1446 = vmatpush1.msra.mxu0 0.0
        %1447 = vmatprep.subr.mxu0 0.0
        %1448 = vmatpush1.msra.mxu0 0.0
        %1449 = vmatprep.subr.mxu0 0.0
        %1450 = vmatpush1.msra.mxu0 0.0
        %1451 = vmatprep.subr.mxu0 0.0
        %1452 = vmatpush1.msra.mxu0 0.0
        %1453 = vmatprep.subr.mxu0 0.0
        %1454 = vmatpush1.msra.mxu0 0.0
        %1455 = vmatprep.subr.mxu0 0.0
        %1456 = vmatpush1.msra.mxu0 0.0
        %1457 = vmatprep.subr.mxu0 0.0
        %1458 = vmatpush1.msra.mxu0 0.0
        %1459 = vmatprep.subr.mxu0 0.0
        %1460 = vmatpush1.msra.mxu0 0.0
        %1461 = vmatprep.subr.mxu0 0.0
        %1462 = vmatpush1.msra.mxu0 0.0
        %1463 = vmatprep.subr.mxu0 0.0
        %1464 = vmatpush1.msra.mxu0 0.0
        %1465 = vmatprep.subr.mxu0 0.0
        %1466 = vmatpush1.msra.mxu0 0.0
        %1467 = vmatprep.subr.mxu0 0.0
        %1468 = vmatpush1.msra.mxu0 0.0
        %1469 = vmatprep.subr.mxu0 0.0
        %1470 = vmatpush1.msra.mxu0 0.0
        %1471 = vmatprep.subr.mxu0 0.0
        %1472 = vmatpush1.msra.mxu0 0.0
        %1473 = vmatprep.subr.mxu0 0.0
        %1474 = vmatpush1.msra.mxu0 0.0
        %1475 = vmatprep.subr.mxu0 0.0
        %1476 = vmatpush1.msra.mxu0 0.0
        %1477 = vmatprep.subr.mxu0 0.0
        %1478 = vmatpush1.msra.mxu0 0.0
        %1479 = vmatprep.subr.mxu0 0.0
        %1480 = vmatpush1.msra.mxu0 0.0
        %1481 = vmatprep.subr.mxu0 0.0
        %1482 = vmatpush1.msra.mxu0 0.0
        %1483 = vmatprep.subr.mxu0 0.0
        %1484 = vmatpush1.msra.mxu0 0.0
        %1485 = vmatprep.subr.mxu0 0.0
        %1486 = vmatpush1.msra.mxu0 0.0
        %1487 = vmatprep.subr.mxu0 0.0
        %1488 = vmatpush1.msra.mxu0 0.0
        %1489 = vmatprep.subr.mxu0 0.0
        %1490 = vmatpush1.msra.mxu0 0.0
        %1491 = vmatprep.mubr.f32.mxu0 0.0
        %1492 = vmatmul.mubr.f32.gmra.mrb[0].mxu0 %v1425
        %v1493 = vpop.f32.mrb[0].mxu0
        %v1494 = vadd.f32 %v1422, %v1493
        %v1495 = vpop.f32.mrb[0].mxu0
        %1496 = vdwg.mxu0
        %v1497 = vmul.f32 %v1494, 0.5
        %v1498 = vmul.f32 %v1494, 0.70710677
        %v1499 = verf.f32.pop %v1498
        %v1500 = vadd.f32 %v1499, 1.0
        %v1501 = vmul.f32 %v1497, %v1500
        %v1502 = vld [vmem:[%s738] sm:$0xff]
        %v1503 = vld [vmem:[%s738 + $0x8] sm:$0xff]
        %v1504 = vld [vmem:[%s738 + $0x10] sm:$0xff]
        %v1505 = vld [vmem:[%s738 + $0x18] sm:$0xff]
        %v1506 = vld [vmem:[%s738 + $0x20] sm:$0xff]
        %v1507 = vld [vmem:[%s738 + $0x28] sm:$0xff]
        %v1508 = vld [vmem:[%s738 + $0x30] sm:$0xff]
        %v1509 = vld [vmem:[%s738 + $0x38] sm:$0xff]
        %v1510 = vld [vmem:[%s741] sm:$0x1]
        %v1512 = vlaneseq
        %v1513 = vshrl.u32 %v1512, 7
        %v1514 = vsub.s32 0, %v1513
        %v1515 = vrot.slane %v1510, %v1514
        %vm1517 = vcmask 523264
        %v1519 = vsel %vm1517, %v1501, 0
        %1521 = vmatprep.subr.mxu0 0.0
        %1522 = vmatpush1.msra.mxu0 %v1502
        %1523 = vmatprep.subr.mxu0 0.0
        %1524 = vmatpush1.msra.mxu0 %v1503
        %1525 = vmatprep.subr.mxu0 0.0
        %1526 = vmatpush1.msra.mxu0 %v1504
        %1527 = vmatprep.subr.mxu0 0.0
        %1528 = vmatpush1.msra.mxu0 %v1505
        %1529 = vmatprep.subr.mxu0 0.0
        %1530 = vmatpush1.msra.mxu0 %v1506
        %1531 = vmatprep.subr.mxu0 0.0
        %1532 = vmatpush1.msra.mxu0 %v1507
        %1533 = vmatprep.subr.mxu0 0.0
        %1534 = vmatpush1.msra.mxu0 %v1508
        %1535 = vmatprep.subr.mxu0 0.0
        %1536 = vmatpush1.msra.mxu0 %v1509
        %1537 = vmatprep.subr.mxu0 0.0
        %1538 = vmatpush1.msra.mxu0 0.0
        %1539 = vmatprep.subr.mxu0 0.0
        %1540 = vmatpush1.msra.mxu0 0.0
        %1541 = vmatprep.subr.mxu0 0.0
        %1542 = vmatpush1.msra.mxu0 0.0
        %1543 = vmatprep.subr.mxu0 0.0
        %1544 = vmatpush1.msra.mxu0 0.0
        %1545 = vmatprep.subr.mxu0 0.0
        %1546 = vmatpush1.msra.mxu0 0.0
        %1547 = vmatprep.subr.mxu0 0.0
        %1548 = vmatpush1.msra.mxu0 0.0
        %1549 = vmatprep.subr.mxu0 0.0
        %1550 = vmatpush1.msra.mxu0 0.0
        %1551 = vmatprep.subr.mxu0 0.0
        %1552 = vmatpush1.msra.mxu0 0.0
        %1553 = vmatprep.subr.mxu0 0.0
        %1554 = vmatpush1.msra.mxu0 0.0
        %1555 = vmatprep.subr.mxu0 0.0
        %1556 = vmatpush1.msra.mxu0 0.0
        %1557 = vmatprep.subr.mxu0 0.0
        %1558 = vmatpush1.msra.mxu0 0.0
        %1559 = vmatprep.subr.mxu0 0.0
        %1560 = vmatpush1.msra.mxu0 0.0
        %1561 = vmatprep.subr.mxu0 0.0
        %1562 = vmatpush1.msra.mxu0 0.0
        %1563 = vmatprep.subr.mxu0 0.0
        %1564 = vmatpush1.msra.mxu0 0.0
        %1565 = vmatprep.subr.mxu0 0.0
        %1566 = vmatpush1.msra.mxu0 0.0
        %1567 = vmatprep.subr.mxu0 0.0
        %1568 = vmatpush1.msra.mxu0 0.0
        %1569 = vmatprep.subr.mxu0 0.0
        %1570 = vmatpush1.msra.mxu0 0.0
        %1571 = vmatprep.subr.mxu0 0.0
        %1572 = vmatpush1.msra.mxu0 0.0
        %1573 = vmatprep.subr.mxu0 0.0
        %1574 = vmatpush1.msra.mxu0 0.0
        %1575 = vmatprep.subr.mxu0 0.0
        %1576 = vmatpush1.msra.mxu0 0.0
        %1577 = vmatprep.subr.mxu0 0.0
        %1578 = vmatpush1.msra.mxu0 0.0
        %1579 = vmatprep.subr.mxu0 0.0
        %1580 = vmatpush1.msra.mxu0 0.0
        %1581 = vmatprep.subr.mxu0 0.0
        %1582 = vmatpush1.msra.mxu0 0.0
        %1583 = vmatprep.subr.mxu0 0.0
        %1584 = vmatpush1.msra.mxu0 0.0
        %1585 = vmatprep.mubr.f32.mxu0 0.0
        %1586 = vmatmul.mubr.f32.gmra.mrb[0].mxu0 %v1519
        %v1587 = vpop.f32.mrb[0].mxu0
        %v1588 = vadd.f32 %v1515, %v1587
        %v1589 = vpop.f32.mrb[0].mxu0
        %1590 = vdwg.mxu0
        %v1591 = vadd.f32 %v1412, %v1588
        %v1592 = vld [vmem:[%s744] sm:$0x1]
        %v1593 = vld [vmem:[%s747] sm:$0x1]
        %v1594 = vsel %vm888, %v1591, 0.0
        %1595 = vadd.xlane.f32.xlu0 %v1594
        %v1596 = vpop.xlane.xlu0 %1595
        %v1597 = vmul.f32 %v1596, %v1388
        %v1598 = vsub.f32 %v1591, %v1597
        %v1599 = vmul.f32 %v1598, %v1598
        %v1600 = vsel %vm888, %v1599, 0.0
        %1601 = vadd.xlane.f32.xlu0 %v1600
        %v1602 = vpop.xlane.xlu0 %1601
        %v1603 = vmul.f32 %v1602, %v1388
        %v1604 = vadd.f32 %v1603, 1e-12
        %v1605 = vrsqrt.pop %v1604
        %v1606 = vmul.f32 %v1598, %v1605
        %v1608 = vlaneseq
        %v1609 = vshrl.u32 %v1608, 7
        %v1610 = vsub.s32 0, %v1609
        %v1611 = vrot.slane %v1592, %v1610
        %v1613 = vmul.f32 %v1606, %v1611
        %v1615 = vlaneseq
        %v1616 = vshrl.u32 %v1615, 7
        %v1617 = vsub.s32 0, %v1616
        %v1618 = vrot.slane %v1593, %v1617
        %v1620 = vadd.f32 %v1613, %v1618
        %1621 = vst.msk [vmem:[#allocation2] sm:$0xff] %vm888, %v1620
        %p1622 = scmp.eq.s32.totalorder %s36, 1
        // Predicated region
        $region93: #{get_bert_forward.1} parent=87 // pred_check
          %p1623 = pneg %p1622
        $region94: #{get_bert_forward.1} parent=87 // pred_check_branch
          %1625 = sbr.rel (%p1623) target = $region96
        $region95: #{get_bert_forward.1} parent=87 // pred_region
          %1626 = vst.msk [vmem:[%s699] sm:$0xff] %vm888, %v1620
        $region96: #{get_bert_forward.1} parent=87 // pred_fallthru
          _
        %s1627 = sand.u32 %s473, 1
        %s1628 = scalar_lea.sflag [#allocation4], %s1627
        %s1629 = sand.u32 %s473, 1
        %s1630 = smul.addr %s1629, 8
        %s1631 = scalar_lea.vmem [#allocation3], %s1630
        // Predicated region
        $region97: #{get_bert_forward.1} parent=87 // pred_check
          %p1632 = pneg %p483
        $region98: #{get_bert_forward.1} parent=87 // pred_check_branch
          %1634 = sbr.rel (%p1632) target = $region100
        $region99: #{get_bert_forward.1} parent=87 // pred_region
          %s1636 = ssub.s32 128, 128
          %1637 = vsyncadd %s1628, %s1636
          %s1638 = smul.addr %s35, 128
          %s1639 = scalar_lea.hbm %s17, %s1638
          %s1641 = sshll.u32 %s1631, 4
          %s1642 = int_to_ptr.vmem [resolvable:$true] %s1641
          %1644 = dma.vmem_to_hbm [thread:$0]  %s1642, 128, %s1639, %s1628
        $region100: #{get_bert_forward.1} parent=87 // pred_fallthru
          _
      $region88: #{get_bert_forward.1} parent=5 // pred_fallthru
        _
      %p1645 = scmp.le.s32.totalorder 2, %s26
      // Predicated region
      $region101: #{get_bert_forward.1} parent=5 // pred_check
        %p1646 = pneg %p1645
      $region102: #{get_bert_forward.1} parent=5 // pred_check_branch
        %1648 = sbr.rel (%p1646) target = $region104
      $region103: #{get_bert_forward.1} parent=5 // pred_region
        %s1649 = ssub.s32 %s26, 2
        // Predicated region
        $region105: #{get_bert_forward.1} parent=103 // pred_check
          %p1650 = pneg %p489
        $region106: #{get_bert_forward.1} parent=103 // pred_check_branch
          %1652 = sbr.rel (%p1650) target = $region108
        $region107: #{get_bert_forward.1} parent=103 // pred_region
          %s1653 = sand.u32 %s474, 1
          %s1654 = scalar_lea.sflag [#allocation4], %s1653
          %s1655 = sand.u32 %s474, 1
          %s1656 = smul.addr %s1655, 8
          %s1657 = scalar_lea.vmem [#allocation3], %s1656
          %1658 = dma.done %s1654, 128
        $region108: #{get_bert_forward.1} parent=103 // pred_fallthru
          _
      $region104: #{get_bert_forward.1} parent=5 // pred_fallthru
        _
    $region6: #{get_bert_forward.1} parent=1 // loop_footer
      %s30 = sadd.s32 1, %s26
    $region7: #{get_bert_forward.1} parent=1 // loop_footer_branch
      %25 = sbr.rel target = $region3
    $region8: #{get_bert_forward.1} parent=1 // loop_exit
      _
    %1659 = vsyncpa [#allocation4], 1
    %s1660 = scalar_lea.sflag [#allocation4], 1
    %1661 = vsyncpa %s1660, 1

</llo_original>
